<compile_context>
chip_gen: v7x
topology: tpu7x:2x2x1
jax: 0.10.0
libtpu: 0.0.40
codegen_flags: <defaults>
</compile_context>

<pallas_src>
import math
import functools

import jax
import jax.numpy as jnp
from jax.experimental import pallas as pl
from jax.experimental.pallas import tpu as pltpu


# ----------------------------- in-kernel helpers -----------------------------

_ERF_A = (0.254829592, -0.284496736, 1.421413741, -1.453152027, 1.061405429)
_ERF_P = 0.3275911


def _erf_approx(v):
    # Abramowitz & Stegun 7.1.26 (|err| < 1.5e-7); avoids relying on an exact
    # erf lowering inside Mosaic (exp / mul / add only).
    sgn = jnp.where(v >= 0.0, 1.0, -1.0)
    a = jnp.abs(v)
    t = 1.0 / (1.0 + _ERF_P * a)
    a1, a2, a3, a4, a5 = _ERF_A
    poly = ((((a5 * t + a4) * t + a3) * t + a2) * t + a1) * t
    return sgn * (1.0 - poly * jnp.exp(-a * a))


def _gelu(v):
    # TODO(synk): PyTorch default GELU is erf-exact; approximated to ~1.5e-7.
    return 0.5 * v * (1.0 + _erf_approx(v * (1.0 / math.sqrt(2.0))))


# --------------------------------- kernel ------------------------------------

def _clca_kernel(x_ref, skip_ref,
                 lnkv_g_ref, lnkv_b_ref, ln_g_ref, ln_b_ref,
                 wxn_ref, wsn_ref, bgc_ref,
                 wd_ref, bconv_ref,
                 wsb_ref, bsb_ref,
                 w2_ref, b2_ref, ls_ref,
                 o_ref,
                 buf_ref,
                 *, n_channels, t_len, n_taps, pad_amt, dim, ksizes, grouped):
    C, T = n_channels, t_len

    x = x_ref[...].astype(jnp.float32)
    skp = skip_ref[...].astype(jnp.float32)

    def layer_norm(v, g, b):
        mu = jnp.mean(v, axis=-1, keepdims=True)
        var = jnp.mean((v - mu) ** 2, axis=-1, keepdims=True)
        return (v - mu) * jax.lax.rsqrt(var + 1e-5) * g + b

    xn = layer_norm(x, lnkv_g_ref[...], lnkv_b_ref[...])
    sn = layer_norm(skp, ln_g_ref[...], ln_b_ref[...])

    # ---- fused gate (linear1) + cross (linear_cross) projections ------------
    # columns [0:C]  -> pre-sigmoid gate (xn part; sn part added below)
    # columns [C:2C] -> linear_cross(xn)
    both = jnp.dot(xn, wxn_ref[...], preferred_element_type=jnp.float32) + bgc_ref[...]
    gate = both[:, :C] + jnp.dot(sn, wsn_ref[...], preferred_element_type=jnp.float32)
    cross = both[:, C:]
    y = (1.0 / (1.0 + jnp.exp(-gate))) * cross                      # (T, C)

    # ---- unified multi-scale depthwise conv along time ----------------------
    # One zero-padded (n_taps, C) tap table holds all 4 kernels (7/15/33/65),
    # centre-aligned for 'same' padding.  Halo rows are re-zeroed each grid
    # step (never gate this on program_id: the grid may be core-sharded).
    zeros_pad = jnp.zeros((pad_amt, C), jnp.float32)
    buf_ref[0:pad_amt, :] = zeros_pad
    buf_ref[pad_amt + T:pad_amt + T + pad_amt, :] = zeros_pad
    buf_ref[pad_amt:pad_amt + T, :] = y

    if grouped:
        # dim is a multiple of 128: per-group lane slices are lane-dense, and
        # the total MAC count drops from 65*C to (7+15+33+65)*dim = 30*C.
        parts = []
        for s, k in enumerate(ksizes):
            off = (n_taps - k) // 2
            lo = s * dim
            acc = jnp.zeros((T, dim), jnp.float32)
            for j in range(k):                                      # static unroll
                acc = acc + (buf_ref[off + j:off + j + T, lo:lo + dim]
                             * wd_ref[off + j:off + j + 1, lo:lo + dim])
            parts.append(acc)
        conv = jnp.concatenate(parts, axis=-1)
    else:
        # Small dim (< one vreg of lanes): a single full-lane-width
        # shift-and-MAC loop avoids masked sub-vreg lane slicing.
        conv = jnp.zeros((T, C), jnp.float32)
        for j in range(n_taps):                                     # static unroll
            conv = conv + buf_ref[j:j + T, :] * wd_ref[j:j + 1, :]
    conv = conv + bconv_ref[...]

    # ---- scale_linear (grouped 1x1 conv + scale interleave) + BatchNorm -----
    # folded into a single dense matmul in the wrapper (eval-mode BN).
    z = jnp.dot(conv, wsb_ref[...], preferred_element_type=jnp.float32) + bsb_ref[...]
    z = _gelu(z)

    # ---- linear2 + layer scale + residual ------------------------------------
    # TODO(synk): dropout treated as identity (inference / eval mode).
    out = jnp.dot(z, w2_ref[...], preferred_element_type=jnp.float32) + b2_ref[...]
    o_ref[...] = skp + out * ls_ref[...]


# --------------------------------- wrapper -----------------------------------

def fold_params(p, C, num_heads, ksizes):
    """Fold PyTorch-layout parameters into the kernel's fused layout."""
    dim = C // num_heads
    K = max(ksizes)

    w1_t = p["w1"].T                                   # (2C, C), rows 0:C <- xn
    wc_t = p["wc"].T                                   # (C, C)
    wxn = jnp.concatenate([w1_t[:C, :], wc_t], axis=1)  # (C, 2C)
    wsn = w1_t[C:, :]                                   # (C, C)
    bgc = jnp.concatenate([p["b1"], p["bc"]])[None, :]  # (1, 2C)

    # Unified depthwise tap table: kernel s occupies channels [s*dim,(s+1)*dim)
    # and rows [(K-k)/2, (K-k)/2 + k) (centre aligned for 'same' padding).
    wd = jnp.zeros((K, C), jnp.float32)
    for s, k in enumerate(ksizes):
        off = (K - k) // 2
        wd = wd.at[off:off + k, s * dim:(s + 1) * dim].set(p["dw_w"][s].T)
    bconv = jnp.concatenate(p["dw_b"])[None, :]         # (1, C)

    # scale_linear: Conv1d(C, 2C, 1, groups=dim) acting on interleaved channels
    # c' = d*num_heads + s ; our conv output lives at c = s*dim + d.  Express
    # the grouped conv + interleave permutation as one dense (C, 2C) matrix.
    c_idx = jnp.arange(C)
    o_idx = jnp.arange(2 * C)
    s_of_c = c_idx // dim
    d_of_c = c_idx % dim
    d_of_o = o_idx // (2 * num_heads)
    M = p["wsl"][o_idx[None, :], s_of_c[:, None]]       # (C, 2C): wsl[o, s(c)]
    M = M * (d_of_o[None, :] == d_of_c[:, None]).astype(jnp.float32)

    # Fold eval-mode BatchNorm1d into the same matmul.
    a = p["bn_w"] / jnp.sqrt(p["bn_rv"] + 1e-5)
    wsb = M * a[None, :]
    bsb = (p["bsl"] * a + p["bn_b"] - p["bn_rm"] * a)[None, :]

    return dict(
        lnkv_g=p["ln_kv_g"][None, :], lnkv_b=p["ln_kv_b"][None, :],
        ln_g=p["ln_g"][None, :], ln_b=p["ln_b"][None, :],
        wxn=wxn, wsn=wsn, bgc=bgc,
        wd=wd, bconv=bconv,
        wsb=wsb, bsb=bsb,
        w2_t=p["w2"].T, b2=p["b2"][None, :],
        layer_scale=p["layer_scale"][None, :],
    )


def conv_local_cross_attention(x, skip, kp, *, num_heads, ksizes,
                               force_grouped=None):
    B, T, C = x.shape
    assert num_heads == len(ksizes) == 4, "module structure requires 4 heads"
    K = max(ksizes)
    PAD = (K - 1) // 2
    dim = C // num_heads
    # Grouped conv path only pays off when each group is lane-aligned (>= one
    # full vreg of lanes); otherwise the full-width path avoids masked slices.
    grouped = (dim % 128 == 0) if force_grouped is None else force_grouped

    kernel = functools.partial(_clca_kernel, n_channels=C, t_len=T,
                               n_taps=K, pad_amt=PAD, dim=dim,
                               ksizes=tuple(ksizes), grouped=grouped)

    def row(shape):
        return pl.BlockSpec(shape, lambda b: (0, 0))

    bt_spec = pl.BlockSpec((None, T, C), lambda b: (b, 0, 0))

    return pl.pallas_call(
        kernel,
        out_shape=jax.ShapeDtypeStruct((B, T, C), jnp.float32),
        grid=(B,),
        in_specs=[
            bt_spec, bt_spec,                                   # x, skip
            row((1, C)), row((1, C)), row((1, C)), row((1, C)),  # LN params
            row((C, 2 * C)), row((C, C)), row((1, 2 * C)),       # fused gate/cross
            row((K, C)), row((1, C)),                            # depthwise taps
            row((C, 2 * C)), row((1, 2 * C)),                    # scale_linear+BN
            row((2 * C, C)), row((1, C)),                        # linear2
            row((1, C)),                                         # layer scale
        ],
        out_specs=bt_spec,
        scratch_shapes=[pltpu.VMEM((T + 2 * PAD, C), jnp.float32)],
        compiler_params=pltpu.CompilerParams(dimension_semantics=("parallel",)),
    )(x, skip,
      kp["lnkv_g"], kp["lnkv_b"], kp["ln_g"], kp["ln_b"],
      kp["wxn"], kp["wsn"], kp["bgc"],
      kp["wd"], kp["bconv"],
      kp["wsb"], kp["bsb"],
      kp["w2_t"], kp["b2"], kp["layer_scale"])


# -------------------------------- reference ----------------------------------

def reference(x, skip, p, num_heads, ksizes):
    """Pure-JAX mirror of the PyTorch forward (eval mode), un-fused layouts."""
    B, T, C = x.shape
    dim = C // num_heads
    eps = 1e-5

    def ln(v, g, b):
        mu = v.mean(-1, keepdims=True)
        var = ((v - mu) ** 2).mean(-1, keepdims=True)
        return (v - mu) / jnp.sqrt(var + eps) * g + b

    xn = ln(x, p["ln_kv_g"], p["ln_kv_b"])
    sn = ln(skip, p["ln_g"], p["ln_b"])
    y = jnp.concatenate([xn, sn], axis=-1) @ p["w1"].T + p["b1"]
    xc = xn @ p["wc"].T + p["bc"]
    y = jax.nn.sigmoid(y) * xc
    y = jnp.transpose(y, (0, 2, 1))                               # (B, C, T)

    z = []
    for s, k in enumerate(ksizes):
        ys = y[:, s * dim:(s + 1) * dim, :]
        out = jax.lax.conv_general_dilated(
            ys, p["dw_w"][s][:, None, :], window_strides=(1,),
            padding=[((k - 1) // 2, (k - 1) // 2)],
            dimension_numbers=("NCH", "OIH", "NCH"),
            feature_group_count=dim)
        z.append(out + p["dw_b"][s][None, :, None])
    y = jnp.stack(z, axis=-1)                                     # (B, dim, T, 4)
    y = jnp.transpose(y, (0, 1, 3, 2)).reshape(B, -1, T)          # ch = d*4 + s

    y_r = y.reshape(B, dim, num_heads, T)
    wsl_r = p["wsl"].reshape(dim, 2 * num_heads, num_heads)
    y = jnp.einsum("bdit,dri->bdrt", y_r, wsl_r).reshape(B, 2 * C, T)
    y = y + p["bsl"][None, :, None]

    a = p["bn_w"] / jnp.sqrt(p["bn_rv"] + eps)
    y = (y - p["bn_rm"][None, :, None]) * a[None, :, None] + p["bn_b"][None, :, None]
    y = 0.5 * y * (1.0 + jax.lax.erf(y / jnp.float32(math.sqrt(2.0))))

    y = jnp.transpose(y, (0, 2, 1))                               # (B, T, 2C)
    y = y @ p["w2"].T + p["b2"]
    return skip + y * p["layer_scale"][None, None, :]


# ----------------------------------- main -------------------------------------

if __name__ == "__main__":
    B, T, C, H = 2, 16, 32, 4
    KSIZES = (7, 15, 33, 65)
    dim = C // H

    keys = iter(jax.random.split(jax.random.PRNGKey(0), 32))

    def nrm(shape, scale=0.1):
        return scale * jax.random.normal(next(keys), shape, jnp.float32)

    raw = {
        "ln_kv_g": 1.0 + nrm((C,)), "ln_kv_b": nrm((C,)),
        "ln_g": 1.0 + nrm((C,)),    "ln_b": nrm((C,)),
        "w1": nrm((C, 2 * C)),      "b1": nrm((C,)),
        "wc": nrm((C, C)),          "bc": nrm((C,)),
        "dw_w": [nrm((dim, k), 0.2) for k in KSIZES],
        "dw_b": [nrm((dim,)) for _ in KSIZES],
        "wsl": nrm((2 * C, H)),     "bsl": nrm((2 * C,)),
        "bn_w": 1.0 + nrm((2 * C,)), "bn_b": nrm((2 * C,)),
        "bn_rm": nrm((2 * C,)),     "bn_rv": 1.0 + jnp.abs(nrm((2 * C,))),
        "w2": nrm((C, 2 * C)),      "b2": nrm((C,)),
        "layer_scale": jnp.full((C,), 1e-5, jnp.float32),
    }

    x = jax.random.normal(next(keys), (B, T, C), jnp.float32)
    skip = jax.random.normal(next(keys), (B, T, C), jnp.float32)

    kp = fold_params(raw, C, H, KSIZES)
    ref = reference(x, skip, raw, H, KSIZES)

    # Default path (small dim -> full-lane-width conv loop).
    out = conv_local_cross_attention(x, skip, kp, num_heads=H, ksizes=KSIZES)
    out = jax.block_until_ready(out)
    assert out.shape == (B, T, C)
    assert jnp.allclose(out, ref, rtol=1e-4, atol=1e-6), "output mismatch vs reference"
    assert jnp.allclose(out - skip, ref - skip, rtol=2e-2, atol=1e-6), "branch mismatch"

    # Grouped-conv code path (selected automatically when dim % 128 == 0 at
    # production widths); forced here at small dim purely for correctness.
    out_g = conv_local_cross_attention(x, skip, kp, num_heads=H, ksizes=KSIZES,
                                       force_grouped=True)
    out_g = jax.block_until_ready(out_g)
    assert jnp.allclose(out_g, ref, rtol=1e-4, atol=1e-6), "grouped-path mismatch"
    assert jnp.allclose(out_g - skip, ref - skip, rtol=2e-2, atol=1e-6), \
        "grouped-path branch mismatch"

    print("KERNEL_OK")
</pallas_src>

<mosaic_0001>
module attributes {stable_mosaic.version = 11 : i64} {
  func.func @_clca_kernel(%arg0: i32, %arg1: memref<1x16x32xf32, #tpu.memory_space<vmem>>, %arg2: memref<1x16x32xf32, #tpu.memory_space<vmem>>, %arg3: memref<1x32xf32, #tpu.memory_space<vmem>>, %arg4: memref<1x32xf32, #tpu.memory_space<vmem>>, %arg5: memref<1x32xf32, #tpu.memory_space<vmem>>, %arg6: memref<1x32xf32, #tpu.memory_space<vmem>>, %arg7: memref<32x64xf32, #tpu.memory_space<vmem>>, %arg8: memref<32x32xf32, #tpu.memory_space<vmem>>, %arg9: memref<1x64xf32, #tpu.memory_space<vmem>>, %arg10: memref<65x32xf32, #tpu.memory_space<vmem>>, %arg11: memref<1x32xf32, #tpu.memory_space<vmem>>, %arg12: memref<32x64xf32, #tpu.memory_space<vmem>>, %arg13: memref<1x64xf32, #tpu.memory_space<vmem>>, %arg14: memref<64x32xf32, #tpu.memory_space<vmem>>, %arg15: memref<1x32xf32, #tpu.memory_space<vmem>>, %arg16: memref<1x32xf32, #tpu.memory_space<vmem>>, %arg17: memref<1x16x32xf32, #tpu.memory_space<vmem>>, %arg18: memref<80x32xf32, #tpu.memory_space<vmem>>) attributes {dimension_semantics = [#tpu.dimension_semantics<parallel>], iteration_bounds = array<i64: 2>, scalar_prefetch = 0 : i64, scratch_operands = 1 : i64, tpu.core_type = #tpu.core_type<tc>, window_params = [{transform_indices = @transform_0, window_bounds = array<i64: 1, 16, 32>}, {transform_indices = @transform_1, window_bounds = array<i64: 1, 16, 32>}, {pipeline_mode = #tpu.pipeline_mode<synchronous>, transform_indices = @transform_2, window_bounds = array<i64: 1, 32>}, {pipeline_mode = #tpu.pipeline_mode<synchronous>, transform_indices = @transform_3, window_bounds = array<i64: 1, 32>}, {pipeline_mode = #tpu.pipeline_mode<synchronous>, transform_indices = @transform_4, window_bounds = array<i64: 1, 32>}, {pipeline_mode = #tpu.pipeline_mode<synchronous>, transform_indices = @transform_5, window_bounds = array<i64: 1, 32>}, {pipeline_mode = #tpu.pipeline_mode<synchronous>, transform_indices = @transform_6, window_bounds = array<i64: 32, 64>}, {pipeline_mode = #tpu.pipeline_mode<synchronous>, transform_indices = @transform_7, window_bounds = array<i64: 32, 32>}, {pipeline_mode = #tpu.pipeline_mode<synchronous>, transform_indices = @transform_8, window_bounds = array<i64: 1, 64>}, {pipeline_mode = #tpu.pipeline_mode<synchronous>, transform_indices = @transform_9, window_bounds = array<i64: 65, 32>}, {pipeline_mode = #tpu.pipeline_mode<synchronous>, transform_indices = @transform_10, window_bounds = array<i64: 1, 32>}, {pipeline_mode = #tpu.pipeline_mode<synchronous>, transform_indices = @transform_11, window_bounds = array<i64: 32, 64>}, {pipeline_mode = #tpu.pipeline_mode<synchronous>, transform_indices = @transform_12, window_bounds = array<i64: 1, 64>}, {pipeline_mode = #tpu.pipeline_mode<synchronous>, transform_indices = @transform_13, window_bounds = array<i64: 64, 32>}, {pipeline_mode = #tpu.pipeline_mode<synchronous>, transform_indices = @transform_14, window_bounds = array<i64: 1, 32>}, {pipeline_mode = #tpu.pipeline_mode<synchronous>, transform_indices = @transform_15, window_bounds = array<i64: 1, 32>}, {transform_indices = @transform_16, window_bounds = array<i64: 1, 16, 32>}]} {
    %c0 = arith.constant 0 : index
    %c0_0 = arith.constant 0 : index
    %c0_1 = arith.constant 0 : index
    %0 = vector.load %arg1[%c0, %c0_0, %c0_1] : memref<1x16x32xf32, #tpu.memory_space<vmem>>, vector<1x16x32xf32>
    %1 = vector.shape_cast %0 : vector<1x16x32xf32> to vector<16x32xf32>
    %c0_2 = arith.constant 0 : index
    %c0_3 = arith.constant 0 : index
    %c0_4 = arith.constant 0 : index
    %2 = vector.load %arg2[%c0_2, %c0_3, %c0_4] : memref<1x16x32xf32, #tpu.memory_space<vmem>>, vector<1x16x32xf32>
    %3 = vector.shape_cast %2 : vector<1x16x32xf32> to vector<16x32xf32>
    %c0_5 = arith.constant 0 : index
    %c0_6 = arith.constant 0 : index
    %4 = vector.load %arg3[%c0_5, %c0_6] : memref<1x32xf32, #tpu.memory_space<vmem>>, vector<1x32xf32>
    %c0_7 = arith.constant 0 : index
    %c0_8 = arith.constant 0 : index
    %5 = vector.load %arg4[%c0_7, %c0_8] : memref<1x32xf32, #tpu.memory_space<vmem>>, vector<1x32xf32>
    %cst = arith.constant dense<0.000000e+00> : vector<16xf32>
    %6 = vector.multi_reduction <add>, %1, %cst [1] : vector<16x32xf32> to vector<16xf32>
    %7 = vector.shape_cast %6 : vector<16xf32> to vector<16x1xf32>
    %cst_9 = arith.constant 3.200000e+01 : f32
    %8 = vector.broadcast %cst_9 : f32 to vector<16x1xf32>
    %9 = arith.divf %7, %8 : vector<16x1xf32>
    %10 = vector.broadcast %9 : vector<16x1xf32> to vector<16x32xf32>
    %11 = arith.subf %1, %10 : vector<16x32xf32>
    %12 = arith.mulf %11, %11 : vector<16x32xf32>
    %cst_10 = arith.constant dense<0.000000e+00> : vector<16xf32>
    %13 = vector.multi_reduction <add>, %12, %cst_10 [1] : vector<16x32xf32> to vector<16xf32>
    %14 = vector.shape_cast %13 : vector<16xf32> to vector<16x1xf32>
    %cst_11 = arith.constant 3.200000e+01 : f32
    %15 = vector.broadcast %cst_11 : f32 to vector<16x1xf32>
    %16 = arith.divf %14, %15 : vector<16x1xf32>
    %17 = vector.broadcast %9 : vector<16x1xf32> to vector<16x32xf32>
    %18 = arith.subf %1, %17 : vector<16x32xf32>
    %cst_12 = arith.constant 9.99999974E-6 : f32
    %19 = vector.broadcast %cst_12 : f32 to vector<16x1xf32>
    %20 = arith.addf %16, %19 : vector<16x1xf32>
    %21 = math.rsqrt %20 : vector<16x1xf32>
    %22 = vector.broadcast %21 : vector<16x1xf32> to vector<16x32xf32>
    %23 = arith.mulf %18, %22 : vector<16x32xf32>
    %24 = vector.broadcast %4 : vector<1x32xf32> to vector<16x32xf32>
    %25 = arith.mulf %23, %24 : vector<16x32xf32>
    %26 = vector.broadcast %5 : vector<1x32xf32> to vector<16x32xf32>
    %27 = arith.addf %25, %26 : vector<16x32xf32>
    %c0_13 = arith.constant 0 : index
    %c0_14 = arith.constant 0 : index
    %28 = vector.load %arg5[%c0_13, %c0_14] : memref<1x32xf32, #tpu.memory_space<vmem>>, vector<1x32xf32>
    %c0_15 = arith.constant 0 : index
    %c0_16 = arith.constant 0 : index
    %29 = vector.load %arg6[%c0_15, %c0_16] : memref<1x32xf32, #tpu.memory_space<vmem>>, vector<1x32xf32>
    %cst_17 = arith.constant dense<0.000000e+00> : vector<16xf32>
    %30 = vector.multi_reduction <add>, %3, %cst_17 [1] : vector<16x32xf32> to vector<16xf32>
    %31 = vector.shape_cast %30 : vector<16xf32> to vector<16x1xf32>
    %cst_18 = arith.constant 3.200000e+01 : f32
    %32 = vector.broadcast %cst_18 : f32 to vector<16x1xf32>
    %33 = arith.divf %31, %32 : vector<16x1xf32>
    %34 = vector.broadcast %33 : vector<16x1xf32> to vector<16x32xf32>
    %35 = arith.subf %3, %34 : vector<16x32xf32>
    %36 = arith.mulf %35, %35 : vector<16x32xf32>
    %cst_19 = arith.constant dense<0.000000e+00> : vector<16xf32>
    %37 = vector.multi_reduction <add>, %36, %cst_19 [1] : vector<16x32xf32> to vector<16xf32>
    %38 = vector.shape_cast %37 : vector<16xf32> to vector<16x1xf32>
    %cst_20 = arith.constant 3.200000e+01 : f32
    %39 = vector.broadcast %cst_20 : f32 to vector<16x1xf32>
    %40 = arith.divf %38, %39 : vector<16x1xf32>
    %41 = vector.broadcast %33 : vector<16x1xf32> to vector<16x32xf32>
    %42 = arith.subf %3, %41 : vector<16x32xf32>
    %cst_21 = arith.constant 9.99999974E-6 : f32
    %43 = vector.broadcast %cst_21 : f32 to vector<16x1xf32>
    %44 = arith.addf %40, %43 : vector<16x1xf32>
    %45 = math.rsqrt %44 : vector<16x1xf32>
    %46 = vector.broadcast %45 : vector<16x1xf32> to vector<16x32xf32>
    %47 = arith.mulf %42, %46 : vector<16x32xf32>
    %48 = vector.broadcast %28 : vector<1x32xf32> to vector<16x32xf32>
    %49 = arith.mulf %47, %48 : vector<16x32xf32>
    %50 = vector.broadcast %29 : vector<1x32xf32> to vector<16x32xf32>
    %51 = arith.addf %49, %50 : vector<16x32xf32>
    %c0_22 = arith.constant 0 : index
    %c0_23 = arith.constant 0 : index
    %52 = vector.load %arg7[%c0_22, %c0_23] : memref<32x64xf32, #tpu.memory_space<vmem>>, vector<32x64xf32>
    %cst_24 = arith.constant dense<0.000000e+00> : vector<16x64xf32>
    %53 = tpu.matmul %27, %52, %cst_24 {dimension_numbers = #tpu.dot_dimension_numbers<[1], [0], [0], [1], [0, 0, 1, 1], [], []>} : vector<16x32xf32>, vector<32x64xf32>, vector<16x64xf32> -> vector<16x64xf32>
    %c0_25 = arith.constant 0 : index
    %c0_26 = arith.constant 0 : index
    %54 = vector.load %arg9[%c0_25, %c0_26] : memref<1x64xf32, #tpu.memory_space<vmem>>, vector<1x64xf32>
    %55 = vector.broadcast %54 : vector<1x64xf32> to vector<16x64xf32>
    %56 = arith.addf %53, %55 : vector<16x64xf32>
    %57 = vector.extract_strided_slice %56 {offsets = [0, 0], sizes = [16, 32], strides = [1, 1]} : vector<16x64xf32> to vector<16x32xf32>
    %c0_27 = arith.constant 0 : index
    %c0_28 = arith.constant 0 : index
    %58 = vector.load %arg8[%c0_27, %c0_28] : memref<32x32xf32, #tpu.memory_space<vmem>>, vector<32x32xf32>
    %cst_29 = arith.constant dense<0.000000e+00> : vector<16x32xf32>
    %59 = tpu.matmul %51, %58, %cst_29 {dimension_numbers = #tpu.dot_dimension_numbers<[1], [0], [0], [1], [0, 0, 1, 1], [], []>} : vector<16x32xf32>, vector<32x32xf32>, vector<16x32xf32> -> vector<16x32xf32>
    %60 = arith.addf %57, %59 : vector<16x32xf32>
    %61 = vector.extract_strided_slice %56 {offsets = [0, 32], sizes = [16, 32], strides = [1, 1]} : vector<16x64xf32> to vector<16x32xf32>
    %cst_30 = arith.constant 0.000000e+00 : f32
    %62 = vector.broadcast %cst_30 : f32 to vector<16x32xf32>
    %63 = arith.subf %62, %60 : vector<16x32xf32>
    %64 = math.exp %63 : vector<16x32xf32>
    %cst_31 = arith.constant 1.000000e+00 : f32
    %65 = vector.broadcast %cst_31 : f32 to vector<16x32xf32>
    %66 = arith.addf %65, %64 : vector<16x32xf32>
    %cst_32 = arith.constant 1.000000e+00 : f32
    %67 = vector.broadcast %cst_32 : f32 to vector<16x32xf32>
    %68 = arith.divf %67, %66 : vector<16x32xf32>
    %69 = arith.mulf %68, %61 : vector<16x32xf32>
    %cst_33 = arith.constant 0.000000e+00 : f32
    %70 = vector.broadcast %cst_33 : f32 to vector<32x32xf32>
    %c0_34 = arith.constant 0 : index
    %c0_35 = arith.constant 0 : index
    %71 = vector.load %arg18[%c0_34, %c0_35] : memref<80x32xf32, #tpu.memory_space<vmem>>, vector<32x32xf32>
    tpu.vector_store %arg18[%c0_34, %c0_35], %70 {strides = array<i32>} : memref<80x32xf32, #tpu.memory_space<vmem>>, vector<32x32xf32>,
    %c48 = arith.constant 48 : index
    %c0_36 = arith.constant 0 : index
    %72 = vector.load %arg18[%c48, %c0_36] : memref<80x32xf32, #tpu.memory_space<vmem>>, vector<32x32xf32>
    tpu.vector_store %arg18[%c48, %c0_36], %70 {strides = array<i32>} : memref<80x32xf32, #tpu.memory_space<vmem>>, vector<32x32xf32>,
    %c32 = arith.constant 32 : index
    %c0_37 = arith.constant 0 : index
    %73 = vector.load %arg18[%c32, %c0_37] : memref<80x32xf32, #tpu.memory_space<vmem>>, vector<16x32xf32>
    tpu.vector_store %arg18[%c32, %c0_37], %69 {strides = array<i32>} : memref<80x32xf32, #tpu.memory_space<vmem>>, vector<16x32xf32>,
    %cst_38 = arith.constant 0.000000e+00 : f32
    %74 = vector.broadcast %cst_38 : f32 to vector<16x32xf32>
    %c0_39 = arith.constant 0 : index
    %c0_40 = arith.constant 0 : index
    %75 = vector.load %arg18[%c0_39, %c0_40] : memref<80x32xf32, #tpu.memory_space<vmem>>, vector<16x32xf32>
    %c0_41 = arith.constant 0 : index
    %c0_42 = arith.constant 0 : index
    %76 = vector.load %arg10[%c0_41, %c0_42] : memref<65x32xf32, #tpu.memory_space<vmem>>, vector<1x32xf32>
    %77 = vector.broadcast %76 : vector<1x32xf32> to vector<16x32xf32>
    %78 = arith.mulf %75, %77 : vector<16x32xf32>
    %79 = arith.addf %74, %78 : vector<16x32xf32>
    %c1 = arith.constant 1 : index
    %c0_43 = arith.constant 0 : index
    %80 = vector.load %arg18[%c1, %c0_43] : memref<80x32xf32, #tpu.memory_space<vmem>>, vector<16x32xf32>
    %c1_44 = arith.constant 1 : index
    %c0_45 = arith.constant 0 : index
    %81 = vector.load %arg10[%c1_44, %c0_45] : memref<65x32xf32, #tpu.memory_space<vmem>>, vector<1x32xf32>
    %82 = vector.broadcast %81 : vector<1x32xf32> to vector<16x32xf32>
    %83 = arith.mulf %80, %82 : vector<16x32xf32>
    %84 = arith.addf %79, %83 : vector<16x32xf32>
    %c2 = arith.constant 2 : index
    %c0_46 = arith.constant 0 : index
    %85 = vector.load %arg18[%c2, %c0_46] : memref<80x32xf32, #tpu.memory_space<vmem>>, vector<16x32xf32>
    %c2_47 = arith.constant 2 : index
    %c0_48 = arith.constant 0 : index
    %86 = vector.load %arg10[%c2_47, %c0_48] : memref<65x32xf32, #tpu.memory_space<vmem>>, vector<1x32xf32>
    %87 = vector.broadcast %86 : vector<1x32xf32> to vector<16x32xf32>
    %88 = arith.mulf %85, %87 : vector<16x32xf32>
    %89 = arith.addf %84, %88 : vector<16x32xf32>
    %c3 = arith.constant 3 : index
    %c0_49 = arith.constant 0 : index
    %90 = vector.load %arg18[%c3, %c0_49] : memref<80x32xf32, #tpu.memory_space<vmem>>, vector<16x32xf32>
    %c3_50 = arith.constant 3 : index
    %c0_51 = arith.constant 0 : index
    %91 = vector.load %arg10[%c3_50, %c0_51] : memref<65x32xf32, #tpu.memory_space<vmem>>, vector<1x32xf32>
    %92 = vector.broadcast %91 : vector<1x32xf32> to vector<16x32xf32>
    %93 = arith.mulf %90, %92 : vector<16x32xf32>
    %94 = arith.addf %89, %93 : vector<16x32xf32>
    %c4 = arith.constant 4 : index
    %c0_52 = arith.constant 0 : index
    %95 = vector.load %arg18[%c4, %c0_52] : memref<80x32xf32, #tpu.memory_space<vmem>>, vector<16x32xf32>
    %c4_53 = arith.constant 4 : index
    %c0_54 = arith.constant 0 : index
    %96 = vector.load %arg10[%c4_53, %c0_54] : memref<65x32xf32, #tpu.memory_space<vmem>>, vector<1x32xf32>
    %97 = vector.broadcast %96 : vector<1x32xf32> to vector<16x32xf32>
    %98 = arith.mulf %95, %97 : vector<16x32xf32>
    %99 = arith.addf %94, %98 : vector<16x32xf32>
    %c5 = arith.constant 5 : index
    %c0_55 = arith.constant 0 : index
    %100 = vector.load %arg18[%c5, %c0_55] : memref<80x32xf32, #tpu.memory_space<vmem>>, vector<16x32xf32>
    %c5_56 = arith.constant 5 : index
    %c0_57 = arith.constant 0 : index
    %101 = vector.load %arg10[%c5_56, %c0_57] : memref<65x32xf32, #tpu.memory_space<vmem>>, vector<1x32xf32>
    %102 = vector.broadcast %101 : vector<1x32xf32> to vector<16x32xf32>
    %103 = arith.mulf %100, %102 : vector<16x32xf32>
    %104 = arith.addf %99, %103 : vector<16x32xf32>
    %c6 = arith.constant 6 : index
    %c0_58 = arith.constant 0 : index
    %105 = vector.load %arg18[%c6, %c0_58] : memref<80x32xf32, #tpu.memory_space<vmem>>, vector<16x32xf32>
    %c6_59 = arith.constant 6 : index
    %c0_60 = arith.constant 0 : index
    %106 = vector.load %arg10[%c6_59, %c0_60] : memref<65x32xf32, #tpu.memory_space<vmem>>, vector<1x32xf32>
    %107 = vector.broadcast %106 : vector<1x32xf32> to vector<16x32xf32>
    %108 = arith.mulf %105, %107 : vector<16x32xf32>
    %109 = arith.addf %104, %108 : vector<16x32xf32>
    %c7 = arith.constant 7 : index
    %c0_61 = arith.constant 0 : index
    %110 = vector.load %arg18[%c7, %c0_61] : memref<80x32xf32, #tpu.memory_space<vmem>>, vector<16x32xf32>
    %c7_62 = arith.constant 7 : index
    %c0_63 = arith.constant 0 : index
    %111 = vector.load %arg10[%c7_62, %c0_63] : memref<65x32xf32, #tpu.memory_space<vmem>>, vector<1x32xf32>
    %112 = vector.broadcast %111 : vector<1x32xf32> to vector<16x32xf32>
    %113 = arith.mulf %110, %112 : vector<16x32xf32>
    %114 = arith.addf %109, %113 : vector<16x32xf32>
    %c8 = arith.constant 8 : index
    %c0_64 = arith.constant 0 : index
    %115 = vector.load %arg18[%c8, %c0_64] : memref<80x32xf32, #tpu.memory_space<vmem>>, vector<16x32xf32>
    %c8_65 = arith.constant 8 : index
    %c0_66 = arith.constant 0 : index
    %116 = vector.load %arg10[%c8_65, %c0_66] : memref<65x32xf32, #tpu.memory_space<vmem>>, vector<1x32xf32>
    %117 = vector.broadcast %116 : vector<1x32xf32> to vector<16x32xf32>
    %118 = arith.mulf %115, %117 : vector<16x32xf32>
    %119 = arith.addf %114, %118 : vector<16x32xf32>
    %c9 = arith.constant 9 : index
    %c0_67 = arith.constant 0 : index
    %120 = vector.load %arg18[%c9, %c0_67] : memref<80x32xf32, #tpu.memory_space<vmem>>, vector<16x32xf32>
    %c9_68 = arith.constant 9 : index
    %c0_69 = arith.constant 0 : index
    %121 = vector.load %arg10[%c9_68, %c0_69] : memref<65x32xf32, #tpu.memory_space<vmem>>, vector<1x32xf32>
    %122 = vector.broadcast %121 : vector<1x32xf32> to vector<16x32xf32>
    %123 = arith.mulf %120, %122 : vector<16x32xf32>
    %124 = arith.addf %119, %123 : vector<16x32xf32>
    %c10 = arith.constant 10 : index
    %c0_70 = arith.constant 0 : index
    %125 = vector.load %arg18[%c10, %c0_70] : memref<80x32xf32, #tpu.memory_space<vmem>>, vector<16x32xf32>
    %c10_71 = arith.constant 10 : index
    %c0_72 = arith.constant 0 : index
    %126 = vector.load %arg10[%c10_71, %c0_72] : memref<65x32xf32, #tpu.memory_space<vmem>>, vector<1x32xf32>
    %127 = vector.broadcast %126 : vector<1x32xf32> to vector<16x32xf32>
    %128 = arith.mulf %125, %127 : vector<16x32xf32>
    %129 = arith.addf %124, %128 : vector<16x32xf32>
    %c11 = arith.constant 11 : index
    %c0_73 = arith.constant 0 : index
    %130 = vector.load %arg18[%c11, %c0_73] : memref<80x32xf32, #tpu.memory_space<vmem>>, vector<16x32xf32>
    %c11_74 = arith.constant 11 : index
    %c0_75 = arith.constant 0 : index
    %131 = vector.load %arg10[%c11_74, %c0_75] : memref<65x32xf32, #tpu.memory_space<vmem>>, vector<1x32xf32>
    %132 = vector.broadcast %131 : vector<1x32xf32> to vector<16x32xf32>
    %133 = arith.mulf %130, %132 : vector<16x32xf32>
    %134 = arith.addf %129, %133 : vector<16x32xf32>
    %c12 = arith.constant 12 : index
    %c0_76 = arith.constant 0 : index
    %135 = vector.load %arg18[%c12, %c0_76] : memref<80x32xf32, #tpu.memory_space<vmem>>, vector<16x32xf32>
    %c12_77 = arith.constant 12 : index
    %c0_78 = arith.constant 0 : index
    %136 = vector.load %arg10[%c12_77, %c0_78] : memref<65x32xf32, #tpu.memory_space<vmem>>, vector<1x32xf32>
    %137 = vector.broadcast %136 : vector<1x32xf32> to vector<16x32xf32>
    %138 = arith.mulf %135, %137 : vector<16x32xf32>
    %139 = arith.addf %134, %138 : vector<16x32xf32>
    %c13 = arith.constant 13 : index
    %c0_79 = arith.constant 0 : index
    %140 = vector.load %arg18[%c13, %c0_79] : memref<80x32xf32, #tpu.memory_space<vmem>>, vector<16x32xf32>
    %c13_80 = arith.constant 13 : index
    %c0_81 = arith.constant 0 : index
    %141 = vector.load %arg10[%c13_80, %c0_81] : memref<65x32xf32, #tpu.memory_space<vmem>>, vector<1x32xf32>
    %142 = vector.broadcast %141 : vector<1x32xf32> to vector<16x32xf32>
    %143 = arith.mulf %140, %142 : vector<16x32xf32>
    %144 = arith.addf %139, %143 : vector<16x32xf32>
    %c14 = arith.constant 14 : index
    %c0_82 = arith.constant 0 : index
    %145 = vector.load %arg18[%c14, %c0_82] : memref<80x32xf32, #tpu.memory_space<vmem>>, vector<16x32xf32>
    %c14_83 = arith.constant 14 : index
    %c0_84 = arith.constant 0 : index
    %146 = vector.load %arg10[%c14_83, %c0_84] : memref<65x32xf32, #tpu.memory_space<vmem>>, vector<1x32xf32>
    %147 = vector.broadcast %146 : vector<1x32xf32> to vector<16x32xf32>
    %148 = arith.mulf %145, %147 : vector<16x32xf32>
    %149 = arith.addf %144, %148 : vector<16x32xf32>
    %c15 = arith.constant 15 : index
    %c0_85 = arith.constant 0 : index
    %150 = vector.load %arg18[%c15, %c0_85] : memref<80x32xf32, #tpu.memory_space<vmem>>, vector<16x32xf32>
    %c15_86 = arith.constant 15 : index
    %c0_87 = arith.constant 0 : index
    %151 = vector.load %arg10[%c15_86, %c0_87] : memref<65x32xf32, #tpu.memory_space<vmem>>, vector<1x32xf32>
    %152 = vector.broadcast %151 : vector<1x32xf32> to vector<16x32xf32>
    %153 = arith.mulf %150, %152 : vector<16x32xf32>
    %154 = arith.addf %149, %153 : vector<16x32xf32>
    %c16 = arith.constant 16 : index
    %c0_88 = arith.constant 0 : index
    %155 = vector.load %arg18[%c16, %c0_88] : memref<80x32xf32, #tpu.memory_space<vmem>>, vector<16x32xf32>
    %c16_89 = arith.constant 16 : index
    %c0_90 = arith.constant 0 : index
    %156 = vector.load %arg10[%c16_89, %c0_90] : memref<65x32xf32, #tpu.memory_space<vmem>>, vector<1x32xf32>
    %157 = vector.broadcast %156 : vector<1x32xf32> to vector<16x32xf32>
    %158 = arith.mulf %155, %157 : vector<16x32xf32>
    %159 = arith.addf %154, %158 : vector<16x32xf32>
    %c17 = arith.constant 17 : index
    %c0_91 = arith.constant 0 : index
    %160 = vector.load %arg18[%c17, %c0_91] : memref<80x32xf32, #tpu.memory_space<vmem>>, vector<16x32xf32>
    %c17_92 = arith.constant 17 : index
    %c0_93 = arith.constant 0 : index
    %161 = vector.load %arg10[%c17_92, %c0_93] : memref<65x32xf32, #tpu.memory_space<vmem>>, vector<1x32xf32>
    %162 = vector.broadcast %161 : vector<1x32xf32> to vector<16x32xf32>
    %163 = arith.mulf %160, %162 : vector<16x32xf32>
    %164 = arith.addf %159, %163 : vector<16x32xf32>
    %c18 = arith.constant 18 : index
    %c0_94 = arith.constant 0 : index
    %165 = vector.load %arg18[%c18, %c0_94] : memref<80x32xf32, #tpu.memory_space<vmem>>, vector<16x32xf32>
    %c18_95 = arith.constant 18 : index
    %c0_96 = arith.constant 0 : index
    %166 = vector.load %arg10[%c18_95, %c0_96] : memref<65x32xf32, #tpu.memory_space<vmem>>, vector<1x32xf32>
    %167 = vector.broadcast %166 : vector<1x32xf32> to vector<16x32xf32>
    %168 = arith.mulf %165, %167 : vector<16x32xf32>
    %169 = arith.addf %164, %168 : vector<16x32xf32>
    %c19 = arith.constant 19 : index
    %c0_97 = arith.constant 0 : index
    %170 = vector.load %arg18[%c19, %c0_97] : memref<80x32xf32, #tpu.memory_space<vmem>>, vector<16x32xf32>
    %c19_98 = arith.constant 19 : index
    %c0_99 = arith.constant 0 : index
    %171 = vector.load %arg10[%c19_98, %c0_99] : memref<65x32xf32, #tpu.memory_space<vmem>>, vector<1x32xf32>
    %172 = vector.broadcast %171 : vector<1x32xf32> to vector<16x32xf32>
    %173 = arith.mulf %170, %172 : vector<16x32xf32>
    %174 = arith.addf %169, %173 : vector<16x32xf32>
    %c20 = arith.constant 20 : index
    %c0_100 = arith.constant 0 : index
    %175 = vector.load %arg18[%c20, %c0_100] : memref<80x32xf32, #tpu.memory_space<vmem>>, vector<16x32xf32>
    %c20_101 = arith.constant 20 : index
    %c0_102 = arith.constant 0 : index
    %176 = vector.load %arg10[%c20_101, %c0_102] : memref<65x32xf32, #tpu.memory_space<vmem>>, vector<1x32xf32>
    %177 = vector.broadcast %176 : vector<1x32xf32> to vector<16x32xf32>
    %178 = arith.mulf %175, %177 : vector<16x32xf32>
    %179 = arith.addf %174, %178 : vector<16x32xf32>
    %c21 = arith.constant 21 : index
    %c0_103 = arith.constant 0 : index
    %180 = vector.load %arg18[%c21, %c0_103] : memref<80x32xf32, #tpu.memory_space<vmem>>, vector<16x32xf32>
    %c21_104 = arith.constant 21 : index
    %c0_105 = arith.constant 0 : index
    %181 = vector.load %arg10[%c21_104, %c0_105] : memref<65x32xf32, #tpu.memory_space<vmem>>, vector<1x32xf32>
    %182 = vector.broadcast %181 : vector<1x32xf32> to vector<16x32xf32>
    %183 = arith.mulf %180, %182 : vector<16x32xf32>
    %184 = arith.addf %179, %183 : vector<16x32xf32>
    %c22 = arith.constant 22 : index
    %c0_106 = arith.constant 0 : index
    %185 = vector.load %arg18[%c22, %c0_106] : memref<80x32xf32, #tpu.memory_space<vmem>>, vector<16x32xf32>
    %c22_107 = arith.constant 22 : index
    %c0_108 = arith.constant 0 : index
    %186 = vector.load %arg10[%c22_107, %c0_108] : memref<65x32xf32, #tpu.memory_space<vmem>>, vector<1x32xf32>
    %187 = vector.broadcast %186 : vector<1x32xf32> to vector<16x32xf32>
    %188 = arith.mulf %185, %187 : vector<16x32xf32>
    %189 = arith.addf %184, %188 : vector<16x32xf32>
    %c23 = arith.constant 23 : index
    %c0_109 = arith.constant 0 : index
    %190 = vector.load %arg18[%c23, %c0_109] : memref<80x32xf32, #tpu.memory_space<vmem>>, vector<16x32xf32>
    %c23_110 = arith.constant 23 : index
    %c0_111 = arith.constant 0 : index
    %191 = vector.load %arg10[%c23_110, %c0_111] : memref<65x32xf32, #tpu.memory_space<vmem>>, vector<1x32xf32>
    %192 = vector.broadcast %191 : vector<1x32xf32> to vector<16x32xf32>
    %193 = arith.mulf %190, %192 : vector<16x32xf32>
    %194 = arith.addf %189, %193 : vector<16x32xf32>
    %c24 = arith.constant 24 : index
    %c0_112 = arith.constant 0 : index
    %195 = vector.load %arg18[%c24, %c0_112] : memref<80x32xf32, #tpu.memory_space<vmem>>, vector<16x32xf32>
    %c24_113 = arith.constant 24 : index
    %c0_114 = arith.constant 0 : index
    %196 = vector.load %arg10[%c24_113, %c0_114] : memref<65x32xf32, #tpu.memory_space<vmem>>, vector<1x32xf32>
    %197 = vector.broadcast %196 : vector<1x32xf32> to vector<16x32xf32>
    %198 = arith.mulf %195, %197 : vector<16x32xf32>
    %199 = arith.addf %194, %198 : vector<16x32xf32>
    %c25 = arith.constant 25 : index
    %c0_115 = arith.constant 0 : index
    %200 = vector.load %arg18[%c25, %c0_115] : memref<80x32xf32, #tpu.memory_space<vmem>>, vector<16x32xf32>
    %c25_116 = arith.constant 25 : index
    %c0_117 = arith.constant 0 : index
    %201 = vector.load %arg10[%c25_116, %c0_117] : memref<65x32xf32, #tpu.memory_space<vmem>>, vector<1x32xf32>
    %202 = vector.broadcast %201 : vector<1x32xf32> to vector<16x32xf32>
    %203 = arith.mulf %200, %202 : vector<16x32xf32>
    %204 = arith.addf %199, %203 : vector<16x32xf32>
    %c26 = arith.constant 26 : index
    %c0_118 = arith.constant 0 : index
    %205 = vector.load %arg18[%c26, %c0_118] : memref<80x32xf32, #tpu.memory_space<vmem>>, vector<16x32xf32>
    %c26_119 = arith.constant 26 : index
    %c0_120 = arith.constant 0 : index
    %206 = vector.load %arg10[%c26_119, %c0_120] : memref<65x32xf32, #tpu.memory_space<vmem>>, vector<1x32xf32>
    %207 = vector.broadcast %206 : vector<1x32xf32> to vector<16x32xf32>
    %208 = arith.mulf %205, %207 : vector<16x32xf32>
    %209 = arith.addf %204, %208 : vector<16x32xf32>
    %c27 = arith.constant 27 : index
    %c0_121 = arith.constant 0 : index
    %210 = vector.load %arg18[%c27, %c0_121] : memref<80x32xf32, #tpu.memory_space<vmem>>, vector<16x32xf32>
    %c27_122 = arith.constant 27 : index
    %c0_123 = arith.constant 0 : index
    %211 = vector.load %arg10[%c27_122, %c0_123] : memref<65x32xf32, #tpu.memory_space<vmem>>, vector<1x32xf32>
    %212 = vector.broadcast %211 : vector<1x32xf32> to vector<16x32xf32>
    %213 = arith.mulf %210, %212 : vector<16x32xf32>
    %214 = arith.addf %209, %213 : vector<16x32xf32>
    %c28 = arith.constant 28 : index
    %c0_124 = arith.constant 0 : index
    %215 = vector.load %arg18[%c28, %c0_124] : memref<80x32xf32, #tpu.memory_space<vmem>>, vector<16x32xf32>
    %c28_125 = arith.constant 28 : index
    %c0_126 = arith.constant 0 : index
    %216 = vector.load %arg10[%c28_125, %c0_126] : memref<65x32xf32, #tpu.memory_space<vmem>>, vector<1x32xf32>
    %217 = vector.broadcast %216 : vector<1x32xf32> to vector<16x32xf32>
    %218 = arith.mulf %215, %217 : vector<16x32xf32>
    %219 = arith.addf %214, %218 : vector<16x32xf32>
    %c29 = arith.constant 29 : index
    %c0_127 = arith.constant 0 : index
    %220 = vector.load %arg18[%c29, %c0_127] : memref<80x32xf32, #tpu.memory_space<vmem>>, vector<16x32xf32>
    %c29_128 = arith.constant 29 : index
    %c0_129 = arith.constant 0 : index
    %221 = vector.load %arg10[%c29_128, %c0_129] : memref<65x32xf32, #tpu.memory_space<vmem>>, vector<1x32xf32>
    %222 = vector.broadcast %221 : vector<1x32xf32> to vector<16x32xf32>
    %223 = arith.mulf %220, %222 : vector<16x32xf32>
    %224 = arith.addf %219, %223 : vector<16x32xf32>
    %c30 = arith.constant 30 : index
    %c0_130 = arith.constant 0 : index
    %225 = vector.load %arg18[%c30, %c0_130] : memref<80x32xf32, #tpu.memory_space<vmem>>, vector<16x32xf32>
    %c30_131 = arith.constant 30 : index
    %c0_132 = arith.constant 0 : index
    %226 = vector.load %arg10[%c30_131, %c0_132] : memref<65x32xf32, #tpu.memory_space<vmem>>, vector<1x32xf32>
    %227 = vector.broadcast %226 : vector<1x32xf32> to vector<16x32xf32>
    %228 = arith.mulf %225, %227 : vector<16x32xf32>
    %229 = arith.addf %224, %228 : vector<16x32xf32>
    %c31 = arith.constant 31 : index
    %c0_133 = arith.constant 0 : index
    %230 = vector.load %arg18[%c31, %c0_133] : memref<80x32xf32, #tpu.memory_space<vmem>>, vector<16x32xf32>
    %c31_134 = arith.constant 31 : index
    %c0_135 = arith.constant 0 : index
    %231 = vector.load %arg10[%c31_134, %c0_135] : memref<65x32xf32, #tpu.memory_space<vmem>>, vector<1x32xf32>
    %232 = vector.broadcast %231 : vector<1x32xf32> to vector<16x32xf32>
    %233 = arith.mulf %230, %232 : vector<16x32xf32>
    %234 = arith.addf %229, %233 : vector<16x32xf32>
    %c32_136 = arith.constant 32 : index
    %c0_137 = arith.constant 0 : index
    %235 = vector.load %arg18[%c32_136, %c0_137] : memref<80x32xf32, #tpu.memory_space<vmem>>, vector<16x32xf32>
    %c32_138 = arith.constant 32 : index
    %c0_139 = arith.constant 0 : index
    %236 = vector.load %arg10[%c32_138, %c0_139] : memref<65x32xf32, #tpu.memory_space<vmem>>, vector<1x32xf32>
    %237 = vector.broadcast %236 : vector<1x32xf32> to vector<16x32xf32>
    %238 = arith.mulf %235, %237 : vector<16x32xf32>
    %239 = arith.addf %234, %238 : vector<16x32xf32>
    %c33 = arith.constant 33 : index
    %c0_140 = arith.constant 0 : index
    %240 = vector.load %arg18[%c33, %c0_140] : memref<80x32xf32, #tpu.memory_space<vmem>>, vector<16x32xf32>
    %c33_141 = arith.constant 33 : index
    %c0_142 = arith.constant 0 : index
    %241 = vector.load %arg10[%c33_141, %c0_142] : memref<65x32xf32, #tpu.memory_space<vmem>>, vector<1x32xf32>
    %242 = vector.broadcast %241 : vector<1x32xf32> to vector<16x32xf32>
    %243 = arith.mulf %240, %242 : vector<16x32xf32>
    %244 = arith.addf %239, %243 : vector<16x32xf32>
    %c34 = arith.constant 34 : index
    %c0_143 = arith.constant 0 : index
    %245 = vector.load %arg18[%c34, %c0_143] : memref<80x32xf32, #tpu.memory_space<vmem>>, vector<16x32xf32>
    %c34_144 = arith.constant 34 : index
    %c0_145 = arith.constant 0 : index
    %246 = vector.load %arg10[%c34_144, %c0_145] : memref<65x32xf32, #tpu.memory_space<vmem>>, vector<1x32xf32>
    %247 = vector.broadcast %246 : vector<1x32xf32> to vector<16x32xf32>
    %248 = arith.mulf %245, %247 : vector<16x32xf32>
    %249 = arith.addf %244, %248 : vector<16x32xf32>
    %c35 = arith.constant 35 : index
    %c0_146 = arith.constant 0 : index
    %250 = vector.load %arg18[%c35, %c0_146] : memref<80x32xf32, #tpu.memory_space<vmem>>, vector<16x32xf32>
    %c35_147 = arith.constant 35 : index
    %c0_148 = arith.constant 0 : index
    %251 = vector.load %arg10[%c35_147, %c0_148] : memref<65x32xf32, #tpu.memory_space<vmem>>, vector<1x32xf32>
    %252 = vector.broadcast %251 : vector<1x32xf32> to vector<16x32xf32>
    %253 = arith.mulf %250, %252 : vector<16x32xf32>
    %254 = arith.addf %249, %253 : vector<16x32xf32>
    %c36 = arith.constant 36 : index
    %c0_149 = arith.constant 0 : index
    %255 = vector.load %arg18[%c36, %c0_149] : memref<80x32xf32, #tpu.memory_space<vmem>>, vector<16x32xf32>
    %c36_150 = arith.constant 36 : index
    %c0_151 = arith.constant 0 : index
    %256 = vector.load %arg10[%c36_150, %c0_151] : memref<65x32xf32, #tpu.memory_space<vmem>>, vector<1x32xf32>
    %257 = vector.broadcast %256 : vector<1x32xf32> to vector<16x32xf32>
    %258 = arith.mulf %255, %257 : vector<16x32xf32>
    %259 = arith.addf %254, %258 : vector<16x32xf32>
    %c37 = arith.constant 37 : index
    %c0_152 = arith.constant 0 : index
    %260 = vector.load %arg18[%c37, %c0_152] : memref<80x32xf32, #tpu.memory_space<vmem>>, vector<16x32xf32>
    %c37_153 = arith.constant 37 : index
    %c0_154 = arith.constant 0 : index
    %261 = vector.load %arg10[%c37_153, %c0_154] : memref<65x32xf32, #tpu.memory_space<vmem>>, vector<1x32xf32>
    %262 = vector.broadcast %261 : vector<1x32xf32> to vector<16x32xf32>
    %263 = arith.mulf %260, %262 : vector<16x32xf32>
    %264 = arith.addf %259, %263 : vector<16x32xf32>
    %c38 = arith.constant 38 : index
    %c0_155 = arith.constant 0 : index
    %265 = vector.load %arg18[%c38, %c0_155] : memref<80x32xf32, #tpu.memory_space<vmem>>, vector<16x32xf32>
    %c38_156 = arith.constant 38 : index
    %c0_157 = arith.constant 0 : index
    %266 = vector.load %arg10[%c38_156, %c0_157] : memref<65x32xf32, #tpu.memory_space<vmem>>, vector<1x32xf32>
    %267 = vector.broadcast %266 : vector<1x32xf32> to vector<16x32xf32>
    %268 = arith.mulf %265, %267 : vector<16x32xf32>
    %269 = arith.addf %264, %268 : vector<16x32xf32>
    %c39 = arith.constant 39 : index
    %c0_158 = arith.constant 0 : index
    %270 = vector.load %arg18[%c39, %c0_158] : memref<80x32xf32, #tpu.memory_space<vmem>>, vector<16x32xf32>
    %c39_159 = arith.constant 39 : index
    %c0_160 = arith.constant 0 : index
    %271 = vector.load %arg10[%c39_159, %c0_160] : memref<65x32xf32, #tpu.memory_space<vmem>>, vector<1x32xf32>
    %272 = vector.broadcast %271 : vector<1x32xf32> to vector<16x32xf32>
    %273 = arith.mulf %270, %272 : vector<16x32xf32>
    %274 = arith.addf %269, %273 : vector<16x32xf32>
    %c40 = arith.constant 40 : index
    %c0_161 = arith.constant 0 : index
    %275 = vector.load %arg18[%c40, %c0_161] : memref<80x32xf32, #tpu.memory_space<vmem>>, vector<16x32xf32>
    %c40_162 = arith.constant 40 : index
    %c0_163 = arith.constant 0 : index
    %276 = vector.load %arg10[%c40_162, %c0_163] : memref<65x32xf32, #tpu.memory_space<vmem>>, vector<1x32xf32>
    %277 = vector.broadcast %276 : vector<1x32xf32> to vector<16x32xf32>
    %278 = arith.mulf %275, %277 : vector<16x32xf32>
    %279 = arith.addf %274, %278 : vector<16x32xf32>
    %c41 = arith.constant 41 : index
    %c0_164 = arith.constant 0 : index
    %280 = vector.load %arg18[%c41, %c0_164] : memref<80x32xf32, #tpu.memory_space<vmem>>, vector<16x32xf32>
    %c41_165 = arith.constant 41 : index
    %c0_166 = arith.constant 0 : index
    %281 = vector.load %arg10[%c41_165, %c0_166] : memref<65x32xf32, #tpu.memory_space<vmem>>, vector<1x32xf32>
    %282 = vector.broadcast %281 : vector<1x32xf32> to vector<16x32xf32>
    %283 = arith.mulf %280, %282 : vector<16x32xf32>
    %284 = arith.addf %279, %283 : vector<16x32xf32>
    %c42 = arith.constant 42 : index
    %c0_167 = arith.constant 0 : index
    %285 = vector.load %arg18[%c42, %c0_167] : memref<80x32xf32, #tpu.memory_space<vmem>>, vector<16x32xf32>
    %c42_168 = arith.constant 42 : index
    %c0_169 = arith.constant 0 : index
    %286 = vector.load %arg10[%c42_168, %c0_169] : memref<65x32xf32, #tpu.memory_space<vmem>>, vector<1x32xf32>
    %287 = vector.broadcast %286 : vector<1x32xf32> to vector<16x32xf32>
    %288 = arith.mulf %285, %287 : vector<16x32xf32>
    %289 = arith.addf %284, %288 : vector<16x32xf32>
    %c43 = arith.constant 43 : index
    %c0_170 = arith.constant 0 : index
    %290 = vector.load %arg18[%c43, %c0_170] : memref<80x32xf32, #tpu.memory_space<vmem>>, vector<16x32xf32>
    %c43_171 = arith.constant 43 : index
    %c0_172 = arith.constant 0 : index
    %291 = vector.load %arg10[%c43_171, %c0_172] : memref<65x32xf32, #tpu.memory_space<vmem>>, vector<1x32xf32>
    %292 = vector.broadcast %291 : vector<1x32xf32> to vector<16x32xf32>
    %293 = arith.mulf %290, %292 : vector<16x32xf32>
    %294 = arith.addf %289, %293 : vector<16x32xf32>
    %c44 = arith.constant 44 : index
    %c0_173 = arith.constant 0 : index
    %295 = vector.load %arg18[%c44, %c0_173] : memref<80x32xf32, #tpu.memory_space<vmem>>, vector<16x32xf32>
    %c44_174 = arith.constant 44 : index
    %c0_175 = arith.constant 0 : index
    %296 = vector.load %arg10[%c44_174, %c0_175] : memref<65x32xf32, #tpu.memory_space<vmem>>, vector<1x32xf32>
    %297 = vector.broadcast %296 : vector<1x32xf32> to vector<16x32xf32>
    %298 = arith.mulf %295, %297 : vector<16x32xf32>
    %299 = arith.addf %294, %298 : vector<16x32xf32>
    %c45 = arith.constant 45 : index
    %c0_176 = arith.constant 0 : index
    %300 = vector.load %arg18[%c45, %c0_176] : memref<80x32xf32, #tpu.memory_space<vmem>>, vector<16x32xf32>
    %c45_177 = arith.constant 45 : index
    %c0_178 = arith.constant 0 : index
    %301 = vector.load %arg10[%c45_177, %c0_178] : memref<65x32xf32, #tpu.memory_space<vmem>>, vector<1x32xf32>
    %302 = vector.broadcast %301 : vector<1x32xf32> to vector<16x32xf32>
    %303 = arith.mulf %300, %302 : vector<16x32xf32>
    %304 = arith.addf %299, %303 : vector<16x32xf32>
    %c46 = arith.constant 46 : index
    %c0_179 = arith.constant 0 : index
    %305 = vector.load %arg18[%c46, %c0_179] : memref<80x32xf32, #tpu.memory_space<vmem>>, vector<16x32xf32>
    %c46_180 = arith.constant 46 : index
    %c0_181 = arith.constant 0 : index
    %306 = vector.load %arg10[%c46_180, %c0_181] : memref<65x32xf32, #tpu.memory_space<vmem>>, vector<1x32xf32>
    %307 = vector.broadcast %306 : vector<1x32xf32> to vector<16x32xf32>
    %308 = arith.mulf %305, %307 : vector<16x32xf32>
    %309 = arith.addf %304, %308 : vector<16x32xf32>
    %c47 = arith.constant 47 : index
    %c0_182 = arith.constant 0 : index
    %310 = vector.load %arg18[%c47, %c0_182] : memref<80x32xf32, #tpu.memory_space<vmem>>, vector<16x32xf32>
    %c47_183 = arith.constant 47 : index
    %c0_184 = arith.constant 0 : index
    %311 = vector.load %arg10[%c47_183, %c0_184] : memref<65x32xf32, #tpu.memory_space<vmem>>, vector<1x32xf32>
    %312 = vector.broadcast %311 : vector<1x32xf32> to vector<16x32xf32>
    %313 = arith.mulf %310, %312 : vector<16x32xf32>
    %314 = arith.addf %309, %313 : vector<16x32xf32>
    %c48_185 = arith.constant 48 : index
    %c0_186 = arith.constant 0 : index
    %315 = vector.load %arg18[%c48_185, %c0_186] : memref<80x32xf32, #tpu.memory_space<vmem>>, vector<16x32xf32>
    %c48_187 = arith.constant 48 : index
    %c0_188 = arith.constant 0 : index
    %316 = vector.load %arg10[%c48_187, %c0_188] : memref<65x32xf32, #tpu.memory_space<vmem>>, vector<1x32xf32>
    %317 = vector.broadcast %316 : vector<1x32xf32> to vector<16x32xf32>
    %318 = arith.mulf %315, %317 : vector<16x32xf32>
    %319 = arith.addf %314, %318 : vector<16x32xf32>
    %c49 = arith.constant 49 : index
    %c0_189 = arith.constant 0 : index
    %320 = vector.load %arg18[%c49, %c0_189] : memref<80x32xf32, #tpu.memory_space<vmem>>, vector<16x32xf32>
    %c49_190 = arith.constant 49 : index
    %c0_191 = arith.constant 0 : index
    %321 = vector.load %arg10[%c49_190, %c0_191] : memref<65x32xf32, #tpu.memory_space<vmem>>, vector<1x32xf32>
    %322 = vector.broadcast %321 : vector<1x32xf32> to vector<16x32xf32>
    %323 = arith.mulf %320, %322 : vector<16x32xf32>
    %324 = arith.addf %319, %323 : vector<16x32xf32>
    %c50 = arith.constant 50 : index
    %c0_192 = arith.constant 0 : index
    %325 = vector.load %arg18[%c50, %c0_192] : memref<80x32xf32, #tpu.memory_space<vmem>>, vector<16x32xf32>
    %c50_193 = arith.constant 50 : index
    %c0_194 = arith.constant 0 : index
    %326 = vector.load %arg10[%c50_193, %c0_194] : memref<65x32xf32, #tpu.memory_space<vmem>>, vector<1x32xf32>
    %327 = vector.broadcast %326 : vector<1x32xf32> to vector<16x32xf32>
    %328 = arith.mulf %325, %327 : vector<16x32xf32>
    %329 = arith.addf %324, %328 : vector<16x32xf32>
    %c51 = arith.constant 51 : index
    %c0_195 = arith.constant 0 : index
    %330 = vector.load %arg18[%c51, %c0_195] : memref<80x32xf32, #tpu.memory_space<vmem>>, vector<16x32xf32>
    %c51_196 = arith.constant 51 : index
    %c0_197 = arith.constant 0 : index
    %331 = vector.load %arg10[%c51_196, %c0_197] : memref<65x32xf32, #tpu.memory_space<vmem>>, vector<1x32xf32>
    %332 = vector.broadcast %331 : vector<1x32xf32> to vector<16x32xf32>
    %333 = arith.mulf %330, %332 : vector<16x32xf32>
    %334 = arith.addf %329, %333 : vector<16x32xf32>
    %c52 = arith.constant 52 : index
    %c0_198 = arith.constant 0 : index
    %335 = vector.load %arg18[%c52, %c0_198] : memref<80x32xf32, #tpu.memory_space<vmem>>, vector<16x32xf32>
    %c52_199 = arith.constant 52 : index
    %c0_200 = arith.constant 0 : index
    %336 = vector.load %arg10[%c52_199, %c0_200] : memref<65x32xf32, #tpu.memory_space<vmem>>, vector<1x32xf32>
    %337 = vector.broadcast %336 : vector<1x32xf32> to vector<16x32xf32>
    %338 = arith.mulf %335, %337 : vector<16x32xf32>
    %339 = arith.addf %334, %338 : vector<16x32xf32>
    %c53 = arith.constant 53 : index
    %c0_201 = arith.constant 0 : index
    %340 = vector.load %arg18[%c53, %c0_201] : memref<80x32xf32, #tpu.memory_space<vmem>>, vector<16x32xf32>
    %c53_202 = arith.constant 53 : index
    %c0_203 = arith.constant 0 : index
    %341 = vector.load %arg10[%c53_202, %c0_203] : memref<65x32xf32, #tpu.memory_space<vmem>>, vector<1x32xf32>
    %342 = vector.broadcast %341 : vector<1x32xf32> to vector<16x32xf32>
    %343 = arith.mulf %340, %342 : vector<16x32xf32>
    %344 = arith.addf %339, %343 : vector<16x32xf32>
    %c54 = arith.constant 54 : index
    %c0_204 = arith.constant 0 : index
    %345 = vector.load %arg18[%c54, %c0_204] : memref<80x32xf32, #tpu.memory_space<vmem>>, vector<16x32xf32>
    %c54_205 = arith.constant 54 : index
    %c0_206 = arith.constant 0 : index
    %346 = vector.load %arg10[%c54_205, %c0_206] : memref<65x32xf32, #tpu.memory_space<vmem>>, vector<1x32xf32>
    %347 = vector.broadcast %346 : vector<1x32xf32> to vector<16x32xf32>
    %348 = arith.mulf %345, %347 : vector<16x32xf32>
    %349 = arith.addf %344, %348 : vector<16x32xf32>
    %c55 = arith.constant 55 : index
    %c0_207 = arith.constant 0 : index
    %350 = vector.load %arg18[%c55, %c0_207] : memref<80x32xf32, #tpu.memory_space<vmem>>, vector<16x32xf32>
    %c55_208 = arith.constant 55 : index
    %c0_209 = arith.constant 0 : index
    %351 = vector.load %arg10[%c55_208, %c0_209] : memref<65x32xf32, #tpu.memory_space<vmem>>, vector<1x32xf32>
    %352 = vector.broadcast %351 : vector<1x32xf32> to vector<16x32xf32>
    %353 = arith.mulf %350, %352 : vector<16x32xf32>
    %354 = arith.addf %349, %353 : vector<16x32xf32>
    %c56 = arith.constant 56 : index
    %c0_210 = arith.constant 0 : index
    %355 = vector.load %arg18[%c56, %c0_210] : memref<80x32xf32, #tpu.memory_space<vmem>>, vector<16x32xf32>
    %c56_211 = arith.constant 56 : index
    %c0_212 = arith.constant 0 : index
    %356 = vector.load %arg10[%c56_211, %c0_212] : memref<65x32xf32, #tpu.memory_space<vmem>>, vector<1x32xf32>
    %357 = vector.broadcast %356 : vector<1x32xf32> to vector<16x32xf32>
    %358 = arith.mulf %355, %357 : vector<16x32xf32>
    %359 = arith.addf %354, %358 : vector<16x32xf32>
    %c57 = arith.constant 57 : index
    %c0_213 = arith.constant 0 : index
    %360 = vector.load %arg18[%c57, %c0_213] : memref<80x32xf32, #tpu.memory_space<vmem>>, vector<16x32xf32>
    %c57_214 = arith.constant 57 : index
    %c0_215 = arith.constant 0 : index
    %361 = vector.load %arg10[%c57_214, %c0_215] : memref<65x32xf32, #tpu.memory_space<vmem>>, vector<1x32xf32>
    %362 = vector.broadcast %361 : vector<1x32xf32> to vector<16x32xf32>
    %363 = arith.mulf %360, %362 : vector<16x32xf32>
    %364 = arith.addf %359, %363 : vector<16x32xf32>
    %c58 = arith.constant 58 : index
    %c0_216 = arith.constant 0 : index
    %365 = vector.load %arg18[%c58, %c0_216] : memref<80x32xf32, #tpu.memory_space<vmem>>, vector<16x32xf32>
    %c58_217 = arith.constant 58 : index
    %c0_218 = arith.constant 0 : index
    %366 = vector.load %arg10[%c58_217, %c0_218] : memref<65x32xf32, #tpu.memory_space<vmem>>, vector<1x32xf32>
    %367 = vector.broadcast %366 : vector<1x32xf32> to vector<16x32xf32>
    %368 = arith.mulf %365, %367 : vector<16x32xf32>
    %369 = arith.addf %364, %368 : vector<16x32xf32>
    %c59 = arith.constant 59 : index
    %c0_219 = arith.constant 0 : index
    %370 = vector.load %arg18[%c59, %c0_219] : memref<80x32xf32, #tpu.memory_space<vmem>>, vector<16x32xf32>
    %c59_220 = arith.constant 59 : index
    %c0_221 = arith.constant 0 : index
    %371 = vector.load %arg10[%c59_220, %c0_221] : memref<65x32xf32, #tpu.memory_space<vmem>>, vector<1x32xf32>
    %372 = vector.broadcast %371 : vector<1x32xf32> to vector<16x32xf32>
    %373 = arith.mulf %370, %372 : vector<16x32xf32>
    %374 = arith.addf %369, %373 : vector<16x32xf32>
    %c60 = arith.constant 60 : index
    %c0_222 = arith.constant 0 : index
    %375 = vector.load %arg18[%c60, %c0_222] : memref<80x32xf32, #tpu.memory_space<vmem>>, vector<16x32xf32>
    %c60_223 = arith.constant 60 : index
    %c0_224 = arith.constant 0 : index
    %376 = vector.load %arg10[%c60_223, %c0_224] : memref<65x32xf32, #tpu.memory_space<vmem>>, vector<1x32xf32>
    %377 = vector.broadcast %376 : vector<1x32xf32> to vector<16x32xf32>
    %378 = arith.mulf %375, %377 : vector<16x32xf32>
    %379 = arith.addf %374, %378 : vector<16x32xf32>
    %c61 = arith.constant 61 : index
    %c0_225 = arith.constant 0 : index
    %380 = vector.load %arg18[%c61, %c0_225] : memref<80x32xf32, #tpu.memory_space<vmem>>, vector<16x32xf32>
    %c61_226 = arith.constant 61 : index
    %c0_227 = arith.constant 0 : index
    %381 = vector.load %arg10[%c61_226, %c0_227] : memref<65x32xf32, #tpu.memory_space<vmem>>, vector<1x32xf32>
    %382 = vector.broadcast %381 : vector<1x32xf32> to vector<16x32xf32>
    %383 = arith.mulf %380, %382 : vector<16x32xf32>
    %384 = arith.addf %379, %383 : vector<16x32xf32>
    %c62 = arith.constant 62 : index
    %c0_228 = arith.constant 0 : index
    %385 = vector.load %arg18[%c62, %c0_228] : memref<80x32xf32, #tpu.memory_space<vmem>>, vector<16x32xf32>
    %c62_229 = arith.constant 62 : index
    %c0_230 = arith.constant 0 : index
    %386 = vector.load %arg10[%c62_229, %c0_230] : memref<65x32xf32, #tpu.memory_space<vmem>>, vector<1x32xf32>
    %387 = vector.broadcast %386 : vector<1x32xf32> to vector<16x32xf32>
    %388 = arith.mulf %385, %387 : vector<16x32xf32>
    %389 = arith.addf %384, %388 : vector<16x32xf32>
    %c63 = arith.constant 63 : index
    %c0_231 = arith.constant 0 : index
    %390 = vector.load %arg18[%c63, %c0_231] : memref<80x32xf32, #tpu.memory_space<vmem>>, vector<16x32xf32>
    %c63_232 = arith.constant 63 : index
    %c0_233 = arith.constant 0 : index
    %391 = vector.load %arg10[%c63_232, %c0_233] : memref<65x32xf32, #tpu.memory_space<vmem>>, vector<1x32xf32>
    %392 = vector.broadcast %391 : vector<1x32xf32> to vector<16x32xf32>
    %393 = arith.mulf %390, %392 : vector<16x32xf32>
    %394 = arith.addf %389, %393 : vector<16x32xf32>
    %c64 = arith.constant 64 : index
    %c0_234 = arith.constant 0 : index
    %395 = vector.load %arg18[%c64, %c0_234] : memref<80x32xf32, #tpu.memory_space<vmem>>, vector<16x32xf32>
    %c64_235 = arith.constant 64 : index
    %c0_236 = arith.constant 0 : index
    %396 = vector.load %arg10[%c64_235, %c0_236] : memref<65x32xf32, #tpu.memory_space<vmem>>, vector<1x32xf32>
    %397 = vector.broadcast %396 : vector<1x32xf32> to vector<16x32xf32>
    %398 = arith.mulf %395, %397 : vector<16x32xf32>
    %399 = arith.addf %394, %398 : vector<16x32xf32>
    %c0_237 = arith.constant 0 : index
    %c0_238 = arith.constant 0 : index
    %400 = vector.load %arg11[%c0_237, %c0_238] : memref<1x32xf32, #tpu.memory_space<vmem>>, vector<1x32xf32>
    %401 = vector.broadcast %400 : vector<1x32xf32> to vector<16x32xf32>
    %402 = arith.addf %399, %401 : vector<16x32xf32>
    %c0_239 = arith.constant 0 : index
    %c0_240 = arith.constant 0 : index
    %403 = vector.load %arg12[%c0_239, %c0_240] : memref<32x64xf32, #tpu.memory_space<vmem>>, vector<32x64xf32>
    %cst_241 = arith.constant dense<0.000000e+00> : vector<16x64xf32>
    %404 = tpu.matmul %402, %403, %cst_241 {dimension_numbers = #tpu.dot_dimension_numbers<[1], [0], [0], [1], [0, 0, 1, 1], [], []>} : vector<16x32xf32>, vector<32x64xf32>, vector<16x64xf32> -> vector<16x64xf32>
    %c0_242 = arith.constant 0 : index
    %c0_243 = arith.constant 0 : index
    %405 = vector.load %arg13[%c0_242, %c0_243] : memref<1x64xf32, #tpu.memory_space<vmem>>, vector<1x64xf32>
    %406 = vector.broadcast %405 : vector<1x64xf32> to vector<16x64xf32>
    %407 = arith.addf %404, %406 : vector<16x64xf32>
    %cst_244 = arith.constant 5.000000e-01 : f32
    %408 = vector.broadcast %cst_244 : f32 to vector<16x64xf32>
    %409 = arith.mulf %408, %407 : vector<16x64xf32>
    %cst_245 = arith.constant 0.707106769 : f32
    %410 = vector.broadcast %cst_245 : f32 to vector<16x64xf32>
    %411 = arith.mulf %407, %410 : vector<16x64xf32>
    %cst_246 = arith.constant 0.000000e+00 : f32
    %412 = vector.broadcast %cst_246 : f32 to vector<16x64xf32>
    %413 = arith.cmpf oge, %411, %412 : vector<16x64xf32>
    %cst_247 = arith.constant 1.000000e+00 : f32
    %cst_248 = arith.constant -1.000000e+00 : f32
    %414 = vector.broadcast %cst_247 : f32 to vector<16x64xf32>
    %415 = vector.broadcast %cst_248 : f32 to vector<16x64xf32>
    %416 = arith.select %413, %414, %415 : vector<16x64xi1>, vector<16x64xf32>
    %417 = math.absf %411 : vector<16x64xf32>
    %cst_249 = arith.constant 0.327591091 : f32
    %418 = vector.broadcast %cst_249 : f32 to vector<16x64xf32>
    %419 = arith.mulf %418, %417 : vector<16x64xf32>
    %cst_250 = arith.constant 1.000000e+00 : f32
    %420 = vector.broadcast %cst_250 : f32 to vector<16x64xf32>
    %421 = arith.addf %420, %419 : vector<16x64xf32>
    %cst_251 = arith.constant 1.000000e+00 : f32
    %422 = vector.broadcast %cst_251 : f32 to vector<16x64xf32>
    %423 = arith.divf %422, %421 : vector<16x64xf32>
    %cst_252 = arith.constant 1.06140542 : f32
    %424 = vector.broadcast %cst_252 : f32 to vector<16x64xf32>
    %425 = arith.mulf %424, %423 : vector<16x64xf32>
    %cst_253 = arith.constant -1.45315206 : f32
    %426 = vector.broadcast %cst_253 : f32 to vector<16x64xf32>
    %427 = arith.addf %425, %426 : vector<16x64xf32>
    %428 = arith.mulf %427, %423 : vector<16x64xf32>
    %cst_254 = arith.constant 1.42141378 : f32
    %429 = vector.broadcast %cst_254 : f32 to vector<16x64xf32>
    %430 = arith.addf %428, %429 : vector<16x64xf32>
    %431 = arith.mulf %430, %423 : vector<16x64xf32>
    %cst_255 = arith.constant -0.284496725 : f32
    %432 = vector.broadcast %cst_255 : f32 to vector<16x64xf32>
    %433 = arith.addf %431, %432 : vector<16x64xf32>
    %434 = arith.mulf %433, %423 : vector<16x64xf32>
    %cst_256 = arith.constant 0.254829586 : f32
    %435 = vector.broadcast %cst_256 : f32 to vector<16x64xf32>
    %436 = arith.addf %434, %435 : vector<16x64xf32>
    %437 = arith.mulf %436, %423 : vector<16x64xf32>
    %cst_257 = arith.constant 0.000000e+00 : f32
    %438 = vector.broadcast %cst_257 : f32 to vector<16x64xf32>
    %439 = arith.subf %438, %417 : vector<16x64xf32>
    %440 = arith.mulf %439, %417 : vector<16x64xf32>
    %441 = math.exp %440 : vector<16x64xf32>
    %442 = arith.mulf %437, %441 : vector<16x64xf32>
    %cst_258 = arith.constant 1.000000e+00 : f32
    %443 = vector.broadcast %cst_258 : f32 to vector<16x64xf32>
    %444 = arith.subf %443, %442 : vector<16x64xf32>
    %445 = arith.mulf %416, %444 : vector<16x64xf32>
    %cst_259 = arith.constant 1.000000e+00 : f32
    %446 = vector.broadcast %cst_259 : f32 to vector<16x64xf32>
    %447 = arith.addf %446, %445 : vector<16x64xf32>
    %448 = arith.mulf %409, %447 : vector<16x64xf32>
    %c0_260 = arith.constant 0 : index
    %c0_261 = arith.constant 0 : index
    %449 = vector.load %arg14[%c0_260, %c0_261] : memref<64x32xf32, #tpu.memory_space<vmem>>, vector<64x32xf32>
    %cst_262 = arith.constant dense<0.000000e+00> : vector<16x32xf32>
    %450 = tpu.matmul %448, %449, %cst_262 {dimension_numbers = #tpu.dot_dimension_numbers<[1], [0], [0], [1], [0, 0, 1, 1], [], []>} : vector<16x64xf32>, vector<64x32xf32>, vector<16x32xf32> -> vector<16x32xf32>
    %c0_263 = arith.constant 0 : index
    %c0_264 = arith.constant 0 : index
    %451 = vector.load %arg15[%c0_263, %c0_264] : memref<1x32xf32, #tpu.memory_space<vmem>>, vector<1x32xf32>
    %452 = vector.broadcast %451 : vector<1x32xf32> to vector<16x32xf32>
    %453 = arith.addf %450, %452 : vector<16x32xf32>
    %c0_265 = arith.constant 0 : index
    %c0_266 = arith.constant 0 : index
    %454 = vector.load %arg16[%c0_265, %c0_266] : memref<1x32xf32, #tpu.memory_space<vmem>>, vector<1x32xf32>
    %455 = vector.broadcast %454 : vector<1x32xf32> to vector<16x32xf32>
    %456 = arith.mulf %453, %455 : vector<16x32xf32>
    %457 = arith.addf %3, %456 : vector<16x32xf32>
    %c0_267 = arith.constant 0 : index
    %c0_268 = arith.constant 0 : index
    %c0_269 = arith.constant 0 : index
    %458 = vector.load %arg17[%c0_267, %c0_268, %c0_269] : memref<1x16x32xf32, #tpu.memory_space<vmem>>, vector<1x16x32xf32>
    %459 = vector.shape_cast %458 : vector<1x16x32xf32> to vector<16x32xf32>
    %460 = vector.shape_cast %457 : vector<16x32xf32> to vector<1x16x32xf32>
    tpu.vector_store %arg17[%c0_267, %c0_268, %c0_269], %460 {strides = array<i32>} : memref<1x16x32xf32, #tpu.memory_space<vmem>>, vector<1x16x32xf32>,
    return
  }
  func.func @transform_0(%arg0: i32) -> (i32, i32, i32) {
    %c0_i32 = arith.constant 0 : i32
    %c0_i32_0 = arith.constant 0 : i32
    %c0_i32_1 = arith.constant 0 : i32
    return %arg0, %c0_i32, %c0_i32_0 : i32, i32, i32
  }
  func.func @transform_1(%arg0: i32) -> (i32, i32, i32) {
    %c0_i32 = arith.constant 0 : i32
    %c0_i32_0 = arith.constant 0 : i32
    %c0_i32_1 = arith.constant 0 : i32
    return %arg0, %c0_i32, %c0_i32_0 : i32, i32, i32
  }
  func.func @transform_2(%arg0: i32) -> (i32, i32) {
    %c0_i32 = arith.constant 0 : i32
    %c0_i32_0 = arith.constant 0 : i32
    %c0_i32_1 = arith.constant 0 : i32
    return %c0_i32, %c0_i32_0 : i32, i32
  }
  func.func @transform_3(%arg0: i32) -> (i32, i32) {
    %c0_i32 = arith.constant 0 : i32
    %c0_i32_0 = arith.constant 0 : i32
    %c0_i32_1 = arith.constant 0 : i32
    return %c0_i32, %c0_i32_0 : i32, i32
  }
  func.func @transform_4(%arg0: i32) -> (i32, i32) {
    %c0_i32 = arith.constant 0 : i32
    %c0_i32_0 = arith.constant 0 : i32
    %c0_i32_1 = arith.constant 0 : i32
    return %c0_i32, %c0_i32_0 : i32, i32
  }
  func.func @transform_5(%arg0: i32) -> (i32, i32) {
    %c0_i32 = arith.constant 0 : i32
    %c0_i32_0 = arith.constant 0 : i32
    %c0_i32_1 = arith.constant 0 : i32
    return %c0_i32, %c0_i32_0 : i32, i32
  }
  func.func @transform_6(%arg0: i32) -> (i32, i32) {
    %c0_i32 = arith.constant 0 : i32
    %c0_i32_0 = arith.constant 0 : i32
    %c0_i32_1 = arith.constant 0 : i32
    return %c0_i32, %c0_i32_0 : i32, i32
  }
  func.func @transform_7(%arg0: i32) -> (i32, i32) {
    %c0_i32 = arith.constant 0 : i32
    %c0_i32_0 = arith.constant 0 : i32
    %c0_i32_1 = arith.constant 0 : i32
    return %c0_i32, %c0_i32_0 : i32, i32
  }
  func.func @transform_8(%arg0: i32) -> (i32, i32) {
    %c0_i32 = arith.constant 0 : i32
    %c0_i32_0 = arith.constant 0 : i32
    %c0_i32_1 = arith.constant 0 : i32
    return %c0_i32, %c0_i32_0 : i32, i32
  }
  func.func @transform_9(%arg0: i32) -> (i32, i32) {
    %c0_i32 = arith.constant 0 : i32
    %c0_i32_0 = arith.constant 0 : i32
    %c0_i32_1 = arith.constant 0 : i32
    return %c0_i32, %c0_i32_0 : i32, i32
  }
  func.func @transform_10(%arg0: i32) -> (i32, i32) {
    %c0_i32 = arith.constant 0 : i32
    %c0_i32_0 = arith.constant 0 : i32
    %c0_i32_1 = arith.constant 0 : i32
    return %c0_i32, %c0_i32_0 : i32, i32
  }
  func.func @transform_11(%arg0: i32) -> (i32, i32) {
    %c0_i32 = arith.constant 0 : i32
    %c0_i32_0 = arith.constant 0 : i32
    %c0_i32_1 = arith.constant 0 : i32
    return %c0_i32, %c0_i32_0 : i32, i32
  }
  func.func @transform_12(%arg0: i32) -> (i32, i32) {
    %c0_i32 = arith.constant 0 : i32
    %c0_i32_0 = arith.constant 0 : i32
    %c0_i32_1 = arith.constant 0 : i32
    return %c0_i32, %c0_i32_0 : i32, i32
  }
  func.func @transform_13(%arg0: i32) -> (i32, i32) {
    %c0_i32 = arith.constant 0 : i32
    %c0_i32_0 = arith.constant 0 : i32
    %c0_i32_1 = arith.constant 0 : i32
    return %c0_i32, %c0_i32_0 : i32, i32
  }
  func.func @transform_14(%arg0: i32) -> (i32, i32) {
    %c0_i32 = arith.constant 0 : i32
    %c0_i32_0 = arith.constant 0 : i32
    %c0_i32_1 = arith.constant 0 : i32
    return %c0_i32, %c0_i32_0 : i32, i32
  }
  func.func @transform_15(%arg0: i32) -> (i32, i32) {
    %c0_i32 = arith.constant 0 : i32
    %c0_i32_0 = arith.constant 0 : i32
    %c0_i32_1 = arith.constant 0 : i32
    return %c0_i32, %c0_i32_0 : i32, i32
  }
  func.func @transform_16(%arg0: i32) -> (i32, i32, i32) {
    %c0_i32 = arith.constant 0 : i32
    %c0_i32_0 = arith.constant 0 : i32
    %c0_i32_1 = arith.constant 0 : i32
    return %arg0, %c0_i32, %c0_i32_0 : i32, i32, i32
  }
}

</mosaic_0001>

<llo_original>
// kernel: tpu_custom_call.1
$region0: #{tpu_custom_call.1}
  #allocation0 [shape = 'u32[]', space=smem, size = 0x4, offset = 0x4, fixed_abs, tag = 'smem constant byte address 0x4 - core index']
  #allocation1 [shape = 'u32[144,128]{1,0:T(1,128)}', space=vmem, size = 0x12000, scoped, tag = 'internal scratch']
  #allocation2 [shape = 'f32[80,32]{1,0:T(8,128)}', space=vmem, size = 0xa000, scoped, tag = 'scratch operand']
  %s0 = inlined_call_operand.vmem [shape: f32[2,16,32], index: 0, kind: input, shape index: {}]
  %s1 = inlined_call_operand.vmem [shape: f32[2,16,32], index: 1, kind: input, shape index: {}]
  %s2 = inlined_call_operand.vmem [shape: f32[1,32], index: 2, kind: input, shape index: {}]
  %s3 = inlined_call_operand.vmem [shape: f32[1,32], index: 3, kind: input, shape index: {}]
  %s4 = inlined_call_operand.vmem [shape: f32[1,32], index: 4, kind: input, shape index: {}]
  %s5 = inlined_call_operand.vmem [shape: f32[1,32], index: 5, kind: input, shape index: {}]
  %s6 = inlined_call_operand.vmem [shape: f32[32,64], index: 6, kind: input, shape index: {}]
  %s7 = inlined_call_operand.vmem [shape: f32[32,32], index: 7, kind: input, shape index: {}]
  %s8 = inlined_call_operand.vmem [shape: f32[1,64], index: 8, kind: input, shape index: {}]
  %s9 = inlined_call_operand.vmem [shape: f32[65,32], index: 9, kind: input, shape index: {}]
  %s10 = inlined_call_operand.vmem [shape: f32[1,32], index: 10, kind: input, shape index: {}]
  %s11 = inlined_call_operand.vmem [shape: f32[32,64], index: 11, kind: input, shape index: {}]
  %s12 = inlined_call_operand.vmem [shape: f32[1,64], index: 12, kind: input, shape index: {}]
  %s13 = inlined_call_operand.vmem [shape: f32[64,32], index: 13, kind: input, shape index: {}]
  %s14 = inlined_call_operand.vmem [shape: f32[1,32], index: 14, kind: input, shape index: {}]
  %s15 = inlined_call_operand.vmem [shape: f32[1,32], index: 15, kind: input, shape index: {}]
  %s16 = inlined_call_operand.hbm [shape: f32[2,16,32], index: 16, kind: output, shape index: {}]
  %s17 = sld [smem:[#allocation0]]
  $region97: #{tpu_custom_call.1} parent=0
    _
  %s19 = ssub.s32 1, %s17
  %s20 = scalar_select 0, %s19, %s17
  $region1: #{tpu_custom_call.1} parent=0
    #allocation3 [shape = 'u8[16384]{0}', space=vmem, size = 0x4000, scoped, tag = 'output window, operand 0']
    #allocation4 [shape = 's32[2]{0}', space=sflag, size = 0x8, scoped, tag = 'scoped memory for tpu_custom_call.1']
    %21 = vsyncpa [#allocation4], 0
    %s22 = scalar_lea.sflag [#allocation4], 1
    %23 = vsyncpa %s22, 0
    loop: start=0, step=1, limit=4
    $region2: #{tpu_custom_call.1} parent=1 // loop_pre_header
      _
    $region3: #{tpu_custom_call.1} parent=1 // loop_header
      %s25 = sphi 0, %s29
      %p26 = scmp.ge.s32.totalorder %s25, 4
      %s35 = sphi 0, %s37
      %s38 = sphi 0, %s35
      %s39 = sphi 0, %s38
      %s55 = sphi 0, %s39
      %s61 = sphi 0, %s63
      %s64 = sphi 0, %s61
      %s65 = sphi 0, %s64
      %s81 = sphi 0, %s65
      %s85 = sphi 0, %s85
      %s87 = sphi 0, %s85
      %s88 = sphi 0, %s87
      %s102 = sphi 0, %s88
      %s106 = sphi 0, %s106
      %s108 = sphi 0, %s106
      %s109 = sphi 0, %s108
      %s123 = sphi 0, %s109
      %s127 = sphi 0, %s127
      %s129 = sphi 0, %s127
      %s130 = sphi 0, %s129
      %s144 = sphi 0, %s130
      %s148 = sphi 0, %s148
      %s150 = sphi 0, %s148
      %s151 = sphi 0, %s150
      %s165 = sphi 0, %s151
      %s169 = sphi 0, %s169
      %s171 = sphi 0, %s169
      %s172 = sphi 0, %s171
      %s186 = sphi 0, %s172
      %s190 = sphi 0, %s190
      %s192 = sphi 0, %s190
      %s193 = sphi 0, %s192
      %s207 = sphi 0, %s193
      %s211 = sphi 0, %s211
      %s213 = sphi 0, %s211
      %s214 = sphi 0, %s213
      %s228 = sphi 0, %s214
      %s232 = sphi 0, %s232
      %s234 = sphi 0, %s232
      %s235 = sphi 0, %s234
      %s249 = sphi 0, %s235
      %s253 = sphi 0, %s253
      %s255 = sphi 0, %s253
      %s256 = sphi 0, %s255
      %s270 = sphi 0, %s256
      %s274 = sphi 0, %s274
      %s276 = sphi 0, %s274
      %s277 = sphi 0, %s276
      %s291 = sphi 0, %s277
      %s295 = sphi 0, %s295
      %s297 = sphi 0, %s295
      %s298 = sphi 0, %s297
      %s312 = sphi 0, %s298
      %s316 = sphi 0, %s316
      %s318 = sphi 0, %s316
      %s319 = sphi 0, %s318
      %s333 = sphi 0, %s319
      %s337 = sphi 0, %s337
      %s339 = sphi 0, %s337
      %s340 = sphi 0, %s339
      %s354 = sphi 0, %s340
      %s358 = sphi 0, %s358
      %s360 = sphi 0, %s358
      %s361 = sphi 0, %s360
      %s375 = sphi 0, %s361
      %s381 = sphi 0, %s383
      %s384 = sphi 0, %s381
      %s385 = sphi 0, %s384
      %s401 = sphi 0, %s385
    $region4: #{tpu_custom_call.1} parent=1 // loop_header_branch
      %28 = sbr.rel (%p26) target = $region8
    $region5: #{tpu_custom_call.1} parent=1 // loop_body
      %s30 = ssub.s32 %s25, 1
      %s31 = ssub.s32 %s25, 2
      %s32 = sadd.s32 %s25, 1
      %s33 = ssub.s32 %s25, %s32
      %p34 = scmp.eq.s32.totalorder %s33, 0
      %s36 = sadd.s32 %s35, 1
      %s37 = scalar_select %p34, %s35, %s36
      %p40 = pneg %p34
      %p41 = scmp.eq.s32.totalorder %s25, 1
      %p42 = por %p40, %p41
      %p43 = scmp.ne.s32.totalorder %s35, %s38
      %p44 = scmp.eq.s32.totalorder %s25, 0
      %p45 = por %p43, %p44
      %p46 = scmp.ne.s32.totalorder %s35, %s38
      %p47 = scmp.eq.s32.totalorder %s30, 1
      %p48 = por %p46, %p47
      %p49 = scmp.ne.s32.totalorder %s38, %s39
      %p50 = scmp.eq.s32.totalorder %s30, 0
      %p51 = por %p49, %p50
      %p52 = scmp.ne.s32.totalorder %s38, %s39
      %p53 = scmp.eq.s32.totalorder %s31, 1
      %p54 = por %p52, %p53
      %p56 = scmp.ne.s32.totalorder %s39, %s55
      %p57 = scmp.eq.s32.totalorder %s31, 0
      %p58 = por %p56, %p57
      %s59 = ssub.s32 %s25, %s32
      %p60 = scmp.eq.s32.totalorder %s59, 0
      %s62 = sadd.s32 %s61, 1
      %s63 = scalar_select %p60, %s61, %s62
      %p66 = pneg %p60
      %p67 = scmp.eq.s32.totalorder %s25, 1
      %p68 = por %p66, %p67
      %p69 = scmp.ne.s32.totalorder %s61, %s64
      %p70 = scmp.eq.s32.totalorder %s25, 0
      %p71 = por %p69, %p70
      %p72 = scmp.ne.s32.totalorder %s61, %s64
      %p73 = scmp.eq.s32.totalorder %s30, 1
      %p74 = por %p72, %p73
      %p75 = scmp.ne.s32.totalorder %s64, %s65
      %p76 = scmp.eq.s32.totalorder %s30, 0
      %p77 = por %p75, %p76
      %p78 = scmp.ne.s32.totalorder %s64, %s65
      %p79 = scmp.eq.s32.totalorder %s31, 1
      %p80 = por %p78, %p79
      %p82 = scmp.ne.s32.totalorder %s65, %s81
      %p83 = scmp.eq.s32.totalorder %s31, 0
      %p84 = por %p82, %p83
      %s86 = sadd.s32 %s85, 1
      %p89 = scmp.eq.s32.totalorder %s25, 1
      %p90 = scmp.ne.s32.totalorder %s85, %s87
      %p91 = scmp.eq.s32.totalorder %s25, 0
      %p92 = por %p90, %p91
      %p93 = scmp.ne.s32.totalorder %s85, %s87
      %p94 = scmp.eq.s32.totalorder %s30, 1
      %p95 = por %p93, %p94
      %p96 = scmp.ne.s32.totalorder %s87, %s88
      %p97 = scmp.eq.s32.totalorder %s30, 0
      %p98 = por %p96, %p97
      %p99 = scmp.ne.s32.totalorder %s87, %s88
      %p100 = scmp.eq.s32.totalorder %s31, 1
      %p101 = por %p99, %p100
      %p103 = scmp.ne.s32.totalorder %s88, %s102
      %p104 = scmp.eq.s32.totalorder %s31, 0
      %p105 = por %p103, %p104
      %s107 = sadd.s32 %s106, 1
      %p110 = scmp.eq.s32.totalorder %s25, 1
      %p111 = scmp.ne.s32.totalorder %s106, %s108
      %p112 = scmp.eq.s32.totalorder %s25, 0
      %p113 = por %p111, %p112
      %p114 = scmp.ne.s32.totalorder %s106, %s108
      %p115 = scmp.eq.s32.totalorder %s30, 1
      %p116 = por %p114, %p115
      %p117 = scmp.ne.s32.totalorder %s108, %s109
      %p118 = scmp.eq.s32.totalorder %s30, 0
      %p119 = por %p117, %p118
      %p120 = scmp.ne.s32.totalorder %s108, %s109
      %p121 = scmp.eq.s32.totalorder %s31, 1
      %p122 = por %p120, %p121
      %p124 = scmp.ne.s32.totalorder %s109, %s123
      %p125 = scmp.eq.s32.totalorder %s31, 0
      %p126 = por %p124, %p125
      %s128 = sadd.s32 %s127, 1
      %p131 = scmp.eq.s32.totalorder %s25, 1
      %p132 = scmp.ne.s32.totalorder %s127, %s129
      %p133 = scmp.eq.s32.totalorder %s25, 0
      %p134 = por %p132, %p133
      %p135 = scmp.ne.s32.totalorder %s127, %s129
      %p136 = scmp.eq.s32.totalorder %s30, 1
      %p137 = por %p135, %p136
      %p138 = scmp.ne.s32.totalorder %s129, %s130
      %p139 = scmp.eq.s32.totalorder %s30, 0
      %p140 = por %p138, %p139
      %p141 = scmp.ne.s32.totalorder %s129, %s130
      %p142 = scmp.eq.s32.totalorder %s31, 1
      %p143 = por %p141, %p142
      %p145 = scmp.ne.s32.totalorder %s130, %s144
      %p146 = scmp.eq.s32.totalorder %s31, 0
      %p147 = por %p145, %p146
      %s149 = sadd.s32 %s148, 1
      %p152 = scmp.eq.s32.totalorder %s25, 1
      %p153 = scmp.ne.s32.totalorder %s148, %s150
      %p154 = scmp.eq.s32.totalorder %s25, 0
      %p155 = por %p153, %p154
      %p156 = scmp.ne.s32.totalorder %s148, %s150
      %p157 = scmp.eq.s32.totalorder %s30, 1
      %p158 = por %p156, %p157
      %p159 = scmp.ne.s32.totalorder %s150, %s151
      %p160 = scmp.eq.s32.totalorder %s30, 0
      %p161 = por %p159, %p160
      %p162 = scmp.ne.s32.totalorder %s150, %s151
      %p163 = scmp.eq.s32.totalorder %s31, 1
      %p164 = por %p162, %p163
      %p166 = scmp.ne.s32.totalorder %s151, %s165
      %p167 = scmp.eq.s32.totalorder %s31, 0
      %p168 = por %p166, %p167
      %s170 = sadd.s32 %s169, 1
      %p173 = scmp.eq.s32.totalorder %s25, 1
      %p174 = scmp.ne.s32.totalorder %s169, %s171
      %p175 = scmp.eq.s32.totalorder %s25, 0
      %p176 = por %p174, %p175
      %p177 = scmp.ne.s32.totalorder %s169, %s171
      %p178 = scmp.eq.s32.totalorder %s30, 1
      %p179 = por %p177, %p178
      %p180 = scmp.ne.s32.totalorder %s171, %s172
      %p181 = scmp.eq.s32.totalorder %s30, 0
      %p182 = por %p180, %p181
      %p183 = scmp.ne.s32.totalorder %s171, %s172
      %p184 = scmp.eq.s32.totalorder %s31, 1
      %p185 = por %p183, %p184
      %p187 = scmp.ne.s32.totalorder %s172, %s186
      %p188 = scmp.eq.s32.totalorder %s31, 0
      %p189 = por %p187, %p188
      %s191 = sadd.s32 %s190, 1
      %p194 = scmp.eq.s32.totalorder %s25, 1
      %p195 = scmp.ne.s32.totalorder %s190, %s192
      %p196 = scmp.eq.s32.totalorder %s25, 0
      %p197 = por %p195, %p196
      %p198 = scmp.ne.s32.totalorder %s190, %s192
      %p199 = scmp.eq.s32.totalorder %s30, 1
      %p200 = por %p198, %p199
      %p201 = scmp.ne.s32.totalorder %s192, %s193
      %p202 = scmp.eq.s32.totalorder %s30, 0
      %p203 = por %p201, %p202
      %p204 = scmp.ne.s32.totalorder %s192, %s193
      %p205 = scmp.eq.s32.totalorder %s31, 1
      %p206 = por %p204, %p205
      %p208 = scmp.ne.s32.totalorder %s193, %s207
      %p209 = scmp.eq.s32.totalorder %s31, 0
      %p210 = por %p208, %p209
      %s212 = sadd.s32 %s211, 1
      %p215 = scmp.eq.s32.totalorder %s25, 1
      %p216 = scmp.ne.s32.totalorder %s211, %s213
      %p217 = scmp.eq.s32.totalorder %s25, 0
      %p218 = por %p216, %p217
      %p219 = scmp.ne.s32.totalorder %s211, %s213
      %p220 = scmp.eq.s32.totalorder %s30, 1
      %p221 = por %p219, %p220
      %p222 = scmp.ne.s32.totalorder %s213, %s214
      %p223 = scmp.eq.s32.totalorder %s30, 0
      %p224 = por %p222, %p223
      %p225 = scmp.ne.s32.totalorder %s213, %s214
      %p226 = scmp.eq.s32.totalorder %s31, 1
      %p227 = por %p225, %p226
      %p229 = scmp.ne.s32.totalorder %s214, %s228
      %p230 = scmp.eq.s32.totalorder %s31, 0
      %p231 = por %p229, %p230
      %s233 = sadd.s32 %s232, 1
      %p236 = scmp.eq.s32.totalorder %s25, 1
      %p237 = scmp.ne.s32.totalorder %s232, %s234
      %p238 = scmp.eq.s32.totalorder %s25, 0
      %p239 = por %p237, %p238
      %p240 = scmp.ne.s32.totalorder %s232, %s234
      %p241 = scmp.eq.s32.totalorder %s30, 1
      %p242 = por %p240, %p241
      %p243 = scmp.ne.s32.totalorder %s234, %s235
      %p244 = scmp.eq.s32.totalorder %s30, 0
      %p245 = por %p243, %p244
      %p246 = scmp.ne.s32.totalorder %s234, %s235
      %p247 = scmp.eq.s32.totalorder %s31, 1
      %p248 = por %p246, %p247
      %p250 = scmp.ne.s32.totalorder %s235, %s249
      %p251 = scmp.eq.s32.totalorder %s31, 0
      %p252 = por %p250, %p251
      %s254 = sadd.s32 %s253, 1
      %p257 = scmp.eq.s32.totalorder %s25, 1
      %p258 = scmp.ne.s32.totalorder %s253, %s255
      %p259 = scmp.eq.s32.totalorder %s25, 0
      %p260 = por %p258, %p259
      %p261 = scmp.ne.s32.totalorder %s253, %s255
      %p262 = scmp.eq.s32.totalorder %s30, 1
      %p263 = por %p261, %p262
      %p264 = scmp.ne.s32.totalorder %s255, %s256
      %p265 = scmp.eq.s32.totalorder %s30, 0
      %p266 = por %p264, %p265
      %p267 = scmp.ne.s32.totalorder %s255, %s256
      %p268 = scmp.eq.s32.totalorder %s31, 1
      %p269 = por %p267, %p268
      %p271 = scmp.ne.s32.totalorder %s256, %s270
      %p272 = scmp.eq.s32.totalorder %s31, 0
      %p273 = por %p271, %p272
      %s275 = sadd.s32 %s274, 1
      %p278 = scmp.eq.s32.totalorder %s25, 1
      %p279 = scmp.ne.s32.totalorder %s274, %s276
      %p280 = scmp.eq.s32.totalorder %s25, 0
      %p281 = por %p279, %p280
      %p282 = scmp.ne.s32.totalorder %s274, %s276
      %p283 = scmp.eq.s32.totalorder %s30, 1
      %p284 = por %p282, %p283
      %p285 = scmp.ne.s32.totalorder %s276, %s277
      %p286 = scmp.eq.s32.totalorder %s30, 0
      %p287 = por %p285, %p286
      %p288 = scmp.ne.s32.totalorder %s276, %s277
      %p289 = scmp.eq.s32.totalorder %s31, 1
      %p290 = por %p288, %p289
      %p292 = scmp.ne.s32.totalorder %s277, %s291
      %p293 = scmp.eq.s32.totalorder %s31, 0
      %p294 = por %p292, %p293
      %s296 = sadd.s32 %s295, 1
      %p299 = scmp.eq.s32.totalorder %s25, 1
      %p300 = scmp.ne.s32.totalorder %s295, %s297
      %p301 = scmp.eq.s32.totalorder %s25, 0
      %p302 = por %p300, %p301
      %p303 = scmp.ne.s32.totalorder %s295, %s297
      %p304 = scmp.eq.s32.totalorder %s30, 1
      %p305 = por %p303, %p304
      %p306 = scmp.ne.s32.totalorder %s297, %s298
      %p307 = scmp.eq.s32.totalorder %s30, 0
      %p308 = por %p306, %p307
      %p309 = scmp.ne.s32.totalorder %s297, %s298
      %p310 = scmp.eq.s32.totalorder %s31, 1
      %p311 = por %p309, %p310
      %p313 = scmp.ne.s32.totalorder %s298, %s312
      %p314 = scmp.eq.s32.totalorder %s31, 0
      %p315 = por %p313, %p314
      %s317 = sadd.s32 %s316, 1
      %p320 = scmp.eq.s32.totalorder %s25, 1
      %p321 = scmp.ne.s32.totalorder %s316, %s318
      %p322 = scmp.eq.s32.totalorder %s25, 0
      %p323 = por %p321, %p322
      %p324 = scmp.ne.s32.totalorder %s316, %s318
      %p325 = scmp.eq.s32.totalorder %s30, 1
      %p326 = por %p324, %p325
      %p327 = scmp.ne.s32.totalorder %s318, %s319
      %p328 = scmp.eq.s32.totalorder %s30, 0
      %p329 = por %p327, %p328
      %p330 = scmp.ne.s32.totalorder %s318, %s319
      %p331 = scmp.eq.s32.totalorder %s31, 1
      %p332 = por %p330, %p331
      %p334 = scmp.ne.s32.totalorder %s319, %s333
      %p335 = scmp.eq.s32.totalorder %s31, 0
      %p336 = por %p334, %p335
      %s338 = sadd.s32 %s337, 1
      %p341 = scmp.eq.s32.totalorder %s25, 1
      %p342 = scmp.ne.s32.totalorder %s337, %s339
      %p343 = scmp.eq.s32.totalorder %s25, 0
      %p344 = por %p342, %p343
      %p345 = scmp.ne.s32.totalorder %s337, %s339
      %p346 = scmp.eq.s32.totalorder %s30, 1
      %p347 = por %p345, %p346
      %p348 = scmp.ne.s32.totalorder %s339, %s340
      %p349 = scmp.eq.s32.totalorder %s30, 0
      %p350 = por %p348, %p349
      %p351 = scmp.ne.s32.totalorder %s339, %s340
      %p352 = scmp.eq.s32.totalorder %s31, 1
      %p353 = por %p351, %p352
      %p355 = scmp.ne.s32.totalorder %s340, %s354
      %p356 = scmp.eq.s32.totalorder %s31, 0
      %p357 = por %p355, %p356
      %s359 = sadd.s32 %s358, 1
      %p362 = scmp.eq.s32.totalorder %s25, 1
      %p363 = scmp.ne.s32.totalorder %s358, %s360
      %p364 = scmp.eq.s32.totalorder %s25, 0
      %p365 = por %p363, %p364
      %p366 = scmp.ne.s32.totalorder %s358, %s360
      %p367 = scmp.eq.s32.totalorder %s30, 1
      %p368 = por %p366, %p367
      %p369 = scmp.ne.s32.totalorder %s360, %s361
      %p370 = scmp.eq.s32.totalorder %s30, 0
      %p371 = por %p369, %p370
      %p372 = scmp.ne.s32.totalorder %s360, %s361
      %p373 = scmp.eq.s32.totalorder %s31, 1
      %p374 = por %p372, %p373
      %p376 = scmp.ne.s32.totalorder %s361, %s375
      %p377 = scmp.eq.s32.totalorder %s31, 0
      %p378 = por %p376, %p377
      %s379 = ssub.s32 %s25, %s32
      %p380 = scmp.eq.s32.totalorder %s379, 0
      %s382 = sadd.s32 %s381, 1
      %s383 = scalar_select %p380, %s381, %s382
      %p386 = pneg %p380
      %p387 = scmp.eq.s32.totalorder %s25, 1
      %p388 = por %p386, %p387
      %p389 = scmp.ne.s32.totalorder %s381, %s384
      %p390 = scmp.eq.s32.totalorder %s25, 0
      %p391 = por %p389, %p390
      %p392 = scmp.ne.s32.totalorder %s381, %s384
      %p393 = scmp.eq.s32.totalorder %s30, 1
      %p394 = por %p392, %p393
      %p395 = scmp.ne.s32.totalorder %s384, %s385
      %p396 = scmp.eq.s32.totalorder %s30, 0
      %p397 = por %p395, %p396
      %p398 = scmp.ne.s32.totalorder %s384, %s385
      %p399 = scmp.eq.s32.totalorder %s31, 1
      %p400 = por %p398, %p399
      %p402 = scmp.ne.s32.totalorder %s385, %s401
      %p403 = scmp.eq.s32.totalorder %s31, 0
      %p404 = por %p402, %p403
      %p405 = scmp.le.s32.totalorder 1, %s25
      %p406 = scmp.lt.s32.totalorder %s25, 3
      %p407 = pnand %p405, %p406
      %p408 = pneg %p407
      // Predicated region
      $region9: #{tpu_custom_call.1} parent=5 // pred_check
        _
      $region10: #{tpu_custom_call.1} parent=5 // pred_check_branch
        %410 = sbr.rel (%p407) target = $region12
      $region11: #{tpu_custom_call.1} parent=5 // pred_region
        %s411 = ssub.s32 %s25, 1
        // Predicated region
        $region13: #{tpu_custom_call.1} parent=11 // pred_check
          %p412 = pneg %p98
        $region14: #{tpu_custom_call.1} parent=11 // pred_check_branch
          %414 = sbr.rel (%p412) target = $region16
        $region15: #{tpu_custom_call.1} parent=11 // pred_region
          _
        $region16: #{tpu_custom_call.1} parent=11 // pred_fallthru
          _
        // Predicated region
        $region17: #{tpu_custom_call.1} parent=11 // pred_check
          %p415 = pneg %p119
        $region18: #{tpu_custom_call.1} parent=11 // pred_check_branch
          %417 = sbr.rel (%p415) target = $region20
        $region19: #{tpu_custom_call.1} parent=11 // pred_region
          _
        $region20: #{tpu_custom_call.1} parent=11 // pred_fallthru
          _
        // Predicated region
        $region21: #{tpu_custom_call.1} parent=11 // pred_check
          %p418 = pneg %p140
        $region22: #{tpu_custom_call.1} parent=11 // pred_check_branch
          %420 = sbr.rel (%p418) target = $region24
        $region23: #{tpu_custom_call.1} parent=11 // pred_region
          _
        $region24: #{tpu_custom_call.1} parent=11 // pred_fallthru
          _
        // Predicated region
        $region25: #{tpu_custom_call.1} parent=11 // pred_check
          %p421 = pneg %p161
        $region26: #{tpu_custom_call.1} parent=11 // pred_check_branch
          %423 = sbr.rel (%p421) target = $region28
        $region27: #{tpu_custom_call.1} parent=11 // pred_region
          _
        $region28: #{tpu_custom_call.1} parent=11 // pred_fallthru
          _
        // Predicated region
        $region29: #{tpu_custom_call.1} parent=11 // pred_check
          %p424 = pneg %p182
        $region30: #{tpu_custom_call.1} parent=11 // pred_check_branch
          %426 = sbr.rel (%p424) target = $region32
        $region31: #{tpu_custom_call.1} parent=11 // pred_region
          _
        $region32: #{tpu_custom_call.1} parent=11 // pred_fallthru
          _
        // Predicated region
        $region33: #{tpu_custom_call.1} parent=11 // pred_check
          %p427 = pneg %p203
        $region34: #{tpu_custom_call.1} parent=11 // pred_check_branch
          %429 = sbr.rel (%p427) target = $region36
        $region35: #{tpu_custom_call.1} parent=11 // pred_region
          _
        $region36: #{tpu_custom_call.1} parent=11 // pred_fallthru
          _
        // Predicated region
        $region37: #{tpu_custom_call.1} parent=11 // pred_check
          %p430 = pneg %p224
        $region38: #{tpu_custom_call.1} parent=11 // pred_check_branch
          %432 = sbr.rel (%p430) target = $region40
        $region39: #{tpu_custom_call.1} parent=11 // pred_region
          _
        $region40: #{tpu_custom_call.1} parent=11 // pred_fallthru
          _
        // Predicated region
        $region41: #{tpu_custom_call.1} parent=11 // pred_check
          %p433 = pneg %p245
        $region42: #{tpu_custom_call.1} parent=11 // pred_check_branch
          %435 = sbr.rel (%p433) target = $region44
        $region43: #{tpu_custom_call.1} parent=11 // pred_region
          _
        $region44: #{tpu_custom_call.1} parent=11 // pred_fallthru
          _
        // Predicated region
        $region45: #{tpu_custom_call.1} parent=11 // pred_check
          %p436 = pneg %p266
        $region46: #{tpu_custom_call.1} parent=11 // pred_check_branch
          %438 = sbr.rel (%p436) target = $region48
        $region47: #{tpu_custom_call.1} parent=11 // pred_region
          _
        $region48: #{tpu_custom_call.1} parent=11 // pred_fallthru
          _
        // Predicated region
        $region49: #{tpu_custom_call.1} parent=11 // pred_check
          %p439 = pneg %p287
        $region50: #{tpu_custom_call.1} parent=11 // pred_check_branch
          %441 = sbr.rel (%p439) target = $region52
        $region51: #{tpu_custom_call.1} parent=11 // pred_region
          _
        $region52: #{tpu_custom_call.1} parent=11 // pred_fallthru
          _
        // Predicated region
        $region53: #{tpu_custom_call.1} parent=11 // pred_check
          %p442 = pneg %p308
        $region54: #{tpu_custom_call.1} parent=11 // pred_check_branch
          %444 = sbr.rel (%p442) target = $region56
        $region55: #{tpu_custom_call.1} parent=11 // pred_region
          _
        $region56: #{tpu_custom_call.1} parent=11 // pred_fallthru
          _
        // Predicated region
        $region57: #{tpu_custom_call.1} parent=11 // pred_check
          %p445 = pneg %p329
        $region58: #{tpu_custom_call.1} parent=11 // pred_check_branch
          %447 = sbr.rel (%p445) target = $region60
        $region59: #{tpu_custom_call.1} parent=11 // pred_region
          _
        $region60: #{tpu_custom_call.1} parent=11 // pred_fallthru
          _
        // Predicated region
        $region61: #{tpu_custom_call.1} parent=11 // pred_check
          %p448 = pneg %p350
        $region62: #{tpu_custom_call.1} parent=11 // pred_check_branch
          %450 = sbr.rel (%p448) target = $region64
        $region63: #{tpu_custom_call.1} parent=11 // pred_region
          _
        $region64: #{tpu_custom_call.1} parent=11 // pred_fallthru
          _
        // Predicated region
        $region65: #{tpu_custom_call.1} parent=11 // pred_check
          %p451 = pneg %p371
        $region66: #{tpu_custom_call.1} parent=11 // pred_check_branch
          %453 = sbr.rel (%p451) target = $region68
        $region67: #{tpu_custom_call.1} parent=11 // pred_region
          _
        $region68: #{tpu_custom_call.1} parent=11 // pred_fallthru
          _
      $region12: #{tpu_custom_call.1} parent=5 // pred_fallthru
        _
      %p454 = scmp.lt.s32.totalorder %s25, 2
      // Predicated region
      $region69: #{tpu_custom_call.1} parent=5 // pred_check
        %p455 = pneg %p454
      $region70: #{tpu_custom_call.1} parent=5 // pred_check_branch
        %457 = sbr.rel (%p455) target = $region72
      $region71: #{tpu_custom_call.1} parent=5 // pred_region
        // Predicated region
        $region73: #{tpu_custom_call.1} parent=71 // pred_check
          %p458 = pneg %p45
        $region74: #{tpu_custom_call.1} parent=71 // pred_check_branch
          %460 = sbr.rel (%p458) target = $region76
        $region75: #{tpu_custom_call.1} parent=71 // pred_region
          %p461 = scmp.lt.s32.totalorder %s25, 1
          %s462 = scalar_select %p461, %s25, 1
          %s463 = smul.addr %s462, 2
          %s464 = smul.addr %s463, 8
          %s465 = scalar_lea.vmem %s0, %s464
        $region76: #{tpu_custom_call.1} parent=71 // pred_fallthru
          _
        // Predicated region
        $region77: #{tpu_custom_call.1} parent=71 // pred_check
          %p466 = pneg %p71
        $region78: #{tpu_custom_call.1} parent=71 // pred_check_branch
          %468 = sbr.rel (%p466) target = $region80
        $region79: #{tpu_custom_call.1} parent=71 // pred_region
          %p469 = scmp.lt.s32.totalorder %s25, 1
          %s470 = scalar_select %p469, %s25, 1
          %s471 = smul.addr %s470, 2
          %s472 = smul.addr %s471, 8
          %s473 = scalar_lea.vmem %s1, %s472
        $region80: #{tpu_custom_call.1} parent=71 // pred_fallthru
          _
      $region72: #{tpu_custom_call.1} parent=5 // pred_fallthru
        _
      %p474 = scmp.le.s32.totalorder 1, %s25
      %p475 = scmp.lt.s32.totalorder %s25, 3
      %p476 = pnand %p474, %p475
      %p477 = pneg %p476
      // Predicated region
      $region81: #{tpu_custom_call.1} parent=5 // pred_check
        _
      $region82: #{tpu_custom_call.1} parent=5 // pred_check_branch
        %479 = sbr.rel (%p476) target = $region84
      $region83: #{tpu_custom_call.1} parent=5 // pred_region
        %s480 = ssub.s32 %s25, 1
        %p481 = scmp.lt.s32.totalorder %s30, 1
        %s482 = scalar_select %p481, %s30, 1
        %s483 = smul.addr %s482, 2
        %s484 = smul.addr %s483, 8
        %s485 = scalar_lea.vmem %s0, %s484
        %p486 = pneg %p51
        %p487 = pneg %p48
        %p488 = scmp.lt.s32.totalorder %s30, 1
        %s489 = scalar_select %p488, %s30, 1
        %s490 = smul.addr %s489, 2
        %s491 = smul.addr %s490, 8
        %s492 = scalar_lea.vmem %s1, %s491
        %p493 = pneg %p77
        %p494 = pneg %p74
        %p495 = pneg %p98
        %p496 = pneg %p95
        %p497 = pneg %p119
        %p498 = pneg %p116
        %p499 = pneg %p140
        %p500 = pneg %p137
        %p501 = pneg %p161
        %p502 = pneg %p158
        %p503 = pneg %p182
        %p504 = pneg %p179
        %p505 = pneg %p203
        %p506 = pneg %p200
        %p507 = pneg %p224
        %p508 = pneg %p221
        %p509 = pneg %p245
        %p510 = pneg %p242
        %p511 = pneg %p266
        %p512 = pneg %p263
        %p513 = pneg %p287
        %p514 = pneg %p284
        %p515 = pneg %p308
        %p516 = pneg %p305
        %p517 = pneg %p329
        %p518 = pneg %p326
        %p519 = pneg %p350
        %p520 = pneg %p347
        %p521 = pneg %p371
        %p522 = pneg %p368
        %p523 = pneg %p397
        %p524 = pneg %p394
        %s525 = sand.u32 %s384, 1
        %s526 = scalar_lea.sflag [#allocation4], %s525
        %s527 = sand.u32 %s384, 1
        %s528 = smul.addr %s527, 16
        %s529 = scalar_lea.vmem [#allocation3], %s528
        %p530 = scmp.lt.s32.totalorder %s30, 1
        %s531 = scalar_select %p530, %s30, 1
        %s532 = smul.addr %s531, 2
        %s533 = smul.addr %s532, 8
        %s534 = scalar_lea.vmem %s0, %s533
        %p535 = scmp.lt.s32.totalorder %s30, 1
        %s536 = scalar_select %p535, %s30, 1
        %s537 = smul.addr %s536, 2
        %s538 = smul.addr %s537, 8
        %s539 = scalar_lea.vmem %s1, %s538
        %v540 = vld [vmem:[%s534] sm:$0xff]
        %v541 = vld [vmem:[%s534 + $0x8] sm:$0xff]
        %v542 = vld [vmem:[%s539] sm:$0xff]
        %v543 = vld [vmem:[%s539 + $0x8] sm:$0xff]
        %v544 = vld [vmem:[%s2] sm:$0x1]
        %v545 = vld [vmem:[%s3] sm:$0x1]
        %vm546 = vcmask 261120
        %v547 = vsel %vm546, %v540, 0.0
        %548 = vadd.xlane.f32.xlu0 %v547
        %v549 = vpop.xlane.xlu0 %548
        %v550 = vsel %vm546, %v541, 0.0
        %551 = vadd.xlane.f32.xlu0 %v550
        %v552 = vpop.xlane.xlu0 %551
        %v553 = vrcp.pop 32.0
        %v554 = vmul.f32 %v549, %v553
        %v555 = vmul.f32 %v552, %v553
        %v556 = vsub.f32 %v540, %v554
        %v557 = vsub.f32 %v541, %v555
        %v558 = vmul.f32 %v556, %v556
        %v559 = vmul.f32 %v557, %v557
        %v560 = vsel %vm546, %v558, 0.0
        %561 = vadd.xlane.f32.xlu0 %v560
        %v562 = vpop.xlane.xlu0 %561
        %v563 = vsel %vm546, %v559, 0.0
        %564 = vadd.xlane.f32.xlu0 %v563
        %v565 = vpop.xlane.xlu0 %564
        %v566 = vmul.f32 %v562, %v553
        %v567 = vmul.f32 %v565, %v553
        %v568 = vadd.f32 %v566, 1e-05
        %v569 = vadd.f32 %v567, 1e-05
        %v570 = vrsqrt.pop %v568
        %v571 = vrsqrt.pop %v569
        %v572 = vmul.f32 %v556, %v570
        %v573 = vmul.f32 %v557, %v571
        %v575 = vlaneseq
        %v576 = vshrl.u32 %v575, 7
        %v577 = vsub.s32 0, %v576
        %v578 = vrot.slane %v544, %v577
        %v580 = vmul.f32 %v572, %v578
        %v581 = vmul.f32 %v573, %v578
        %v583 = vlaneseq
        %v584 = vshrl.u32 %v583, 7
        %v585 = vsub.s32 0, %v584
        %v586 = vrot.slane %v545, %v585
        %v588 = vadd.f32 %v580, %v586
        %v589 = vadd.f32 %v581, %v586
        %v590 = vld [vmem:[%s4] sm:$0x1]
        %v591 = vld [vmem:[%s5] sm:$0x1]
        %v592 = vsel %vm546, %v542, 0.0
        %593 = vadd.xlane.f32.xlu0 %v592
        %v594 = vpop.xlane.xlu0 %593
        %v595 = vsel %vm546, %v543, 0.0
        %596 = vadd.xlane.f32.xlu0 %v595
        %v597 = vpop.xlane.xlu0 %596
        %v598 = vmul.f32 %v594, %v553
        %v599 = vmul.f32 %v597, %v553
        %v600 = vsub.f32 %v542, %v598
        %v601 = vsub.f32 %v543, %v599
        %v602 = vmul.f32 %v600, %v600
        %v603 = vmul.f32 %v601, %v601
        %v604 = vsel %vm546, %v602, 0.0
        %605 = vadd.xlane.f32.xlu0 %v604
        %v606 = vpop.xlane.xlu0 %605
        %v607 = vsel %vm546, %v603, 0.0
        %608 = vadd.xlane.f32.xlu0 %v607
        %v609 = vpop.xlane.xlu0 %608
        %v610 = vmul.f32 %v606, %v553
        %v611 = vmul.f32 %v609, %v553
        %v612 = vadd.f32 %v610, 1e-05
        %v613 = vadd.f32 %v611, 1e-05
        %v614 = vrsqrt.pop %v612
        %v615 = vrsqrt.pop %v613
        %v616 = vmul.f32 %v600, %v614
        %v617 = vmul.f32 %v601, %v615
        %v619 = vlaneseq
        %v620 = vshrl.u32 %v619, 7
        %v621 = vsub.s32 0, %v620
        %v622 = vrot.slane %v590, %v621
        %v624 = vmul.f32 %v616, %v622
        %v625 = vmul.f32 %v617, %v622
        %v627 = vlaneseq
        %v628 = vshrl.u32 %v627, 7
        %v629 = vsub.s32 0, %v628
        %v630 = vrot.slane %v591, %v629
        %v632 = vadd.f32 %v624, %v630
        %v633 = vadd.f32 %v625, %v630
        %v634 = vld [vmem:[%s6] sm:$0xff]
        %v635 = vld [vmem:[%s6 + $0x8] sm:$0xff]
        %v636 = vld [vmem:[%s6 + $0x10] sm:$0xff]
        %v637 = vld [vmem:[%s6 + $0x18] sm:$0xff]
        %v638 = vld [vmem:[%s8] sm:$0x1]
        %v640 = vlaneseq
        %v641 = vshrl.u32 %v640, 7
        %v642 = vsub.s32 0, %v641
        %v643 = vrot.slane %v638, %v642
        %v646 = vsel %vm546, %v588, 0
        %v649 = vsel %vm546, %v589, 0
        %651 = vmatprep.subr.mxu0 0.0
        %652 = vmatpush1.msra.mxu0 %v634
        %653 = vmatprep.subr.mxu0 0.0
        %654 = vmatpush1.msra.mxu0 %v635
        %655 = vmatprep.subr.mxu0 0.0
        %656 = vmatpush1.msra.mxu0 %v636
        %657 = vmatprep.subr.mxu0 0.0
        %658 = vmatpush1.msra.mxu0 %v637
        %659 = vmatprep.subr.mxu0 0.0
        %660 = vmatpush1.msra.mxu0 0.0
        %661 = vmatprep.subr.mxu0 0.0
        %662 = vmatpush1.msra.mxu0 0.0
        %663 = vmatprep.subr.mxu0 0.0
        %664 = vmatpush1.msra.mxu0 0.0
        %665 = vmatprep.subr.mxu0 0.0
        %666 = vmatpush1.msra.mxu0 0.0
        %667 = vmatprep.subr.mxu0 0.0
        %668 = vmatpush1.msra.mxu0 0.0
        %669 = vmatprep.subr.mxu0 0.0
        %670 = vmatpush1.msra.mxu0 0.0
        %671 = vmatprep.subr.mxu0 0.0
        %672 = vmatpush1.msra.mxu0 0.0
        %673 = vmatprep.subr.mxu0 0.0
        %674 = vmatpush1.msra.mxu0 0.0
        %675 = vmatprep.subr.mxu0 0.0
        %676 = vmatpush1.msra.mxu0 0.0
        %677 = vmatprep.subr.mxu0 0.0
        %678 = vmatpush1.msra.mxu0 0.0
        %679 = vmatprep.subr.mxu0 0.0
        %680 = vmatpush1.msra.mxu0 0.0
        %681 = vmatprep.subr.mxu0 0.0
        %682 = vmatpush1.msra.mxu0 0.0
        %683 = vmatprep.subr.mxu0 0.0
        %684 = vmatpush1.msra.mxu0 0.0
        %685 = vmatprep.subr.mxu0 0.0
        %686 = vmatpush1.msra.mxu0 0.0
        %687 = vmatprep.subr.mxu0 0.0
        %688 = vmatpush1.msra.mxu0 0.0
        %689 = vmatprep.subr.mxu0 0.0
        %690 = vmatpush1.msra.mxu0 0.0
        %691 = vmatprep.subr.mxu0 0.0
        %692 = vmatpush1.msra.mxu0 0.0
        %693 = vmatprep.subr.mxu0 0.0
        %694 = vmatpush1.msra.mxu0 0.0
        %695 = vmatprep.subr.mxu0 0.0
        %696 = vmatpush1.msra.mxu0 0.0
        %697 = vmatprep.subr.mxu0 0.0
        %698 = vmatpush1.msra.mxu0 0.0
        %699 = vmatprep.subr.mxu0 0.0
        %700 = vmatpush1.msra.mxu0 0.0
        %701 = vmatprep.subr.mxu0 0.0
        %702 = vmatpush1.msra.mxu0 0.0
        %703 = vmatprep.subr.mxu0 0.0
        %704 = vmatpush1.msra.mxu0 0.0
        %705 = vmatprep.subr.mxu0 0.0
        %706 = vmatpush1.msra.mxu0 0.0
        %707 = vmatprep.subr.mxu0 0.0
        %708 = vmatpush1.msra.mxu0 0.0
        %709 = vmatprep.subr.mxu0 0.0
        %710 = vmatpush1.msra.mxu0 0.0
        %711 = vmatprep.subr.mxu0 0.0
        %712 = vmatpush1.msra.mxu0 0.0
        %713 = vmatprep.subr.mxu0 0.0
        %714 = vmatpush1.msra.mxu0 0.0
        %715 = vmatprep.mubr.f32.mxu0 0.0
        %716 = vmatmul.mubr.f32.gmra.mrb[0].mxu0 %v646
        %v717 = vpop.f32.mrb[0].mxu0
        %v718 = vadd.f32 %v643, %v717
        %v719 = vpop.f32.mrb[0].mxu0
        %720 = vmatprep.mubr.f32.mxu0 0.0
        %721 = vmatmul.mubr.f32.gmra.mrb[0].mxu0 %v649
        %v722 = vpop.f32.mrb[0].mxu0
        %v723 = vadd.f32 %v643, %v722
        %v724 = vpop.f32.mrb[0].mxu0
        %725 = vdwg.mxu0
        %v726 = vld [vmem:[%s7] sm:$0xff]
        %v727 = vld [vmem:[%s7 + $0x8] sm:$0xff]
        %v728 = vld [vmem:[%s7 + $0x10] sm:$0xff]
        %v729 = vld [vmem:[%s7 + $0x18] sm:$0xff]
        %v731 = vsel %vm546, %v632, 0
        %v734 = vsel %vm546, %v633, 0
        %736 = vmatprep.subr.mxu0 0.0
        %737 = vmatpush1.msra.mxu0 %v726
        %738 = vmatprep.subr.mxu0 0.0
        %739 = vmatpush1.msra.mxu0 %v727
        %740 = vmatprep.subr.mxu0 0.0
        %741 = vmatpush1.msra.mxu0 %v728
        %742 = vmatprep.subr.mxu0 0.0
        %743 = vmatpush1.msra.mxu0 %v729
        %744 = vmatprep.subr.mxu0 0.0
        %745 = vmatpush1.msra.mxu0 0.0
        %746 = vmatprep.subr.mxu0 0.0
        %747 = vmatpush1.msra.mxu0 0.0
        %748 = vmatprep.subr.mxu0 0.0
        %749 = vmatpush1.msra.mxu0 0.0
        %750 = vmatprep.subr.mxu0 0.0
        %751 = vmatpush1.msra.mxu0 0.0
        %752 = vmatprep.subr.mxu0 0.0
        %753 = vmatpush1.msra.mxu0 0.0
        %754 = vmatprep.subr.mxu0 0.0
        %755 = vmatpush1.msra.mxu0 0.0
        %756 = vmatprep.subr.mxu0 0.0
        %757 = vmatpush1.msra.mxu0 0.0
        %758 = vmatprep.subr.mxu0 0.0
        %759 = vmatpush1.msra.mxu0 0.0
        %760 = vmatprep.subr.mxu0 0.0
        %761 = vmatpush1.msra.mxu0 0.0
        %762 = vmatprep.subr.mxu0 0.0
        %763 = vmatpush1.msra.mxu0 0.0
        %764 = vmatprep.subr.mxu0 0.0
        %765 = vmatpush1.msra.mxu0 0.0
        %766 = vmatprep.subr.mxu0 0.0
        %767 = vmatpush1.msra.mxu0 0.0
        %768 = vmatprep.subr.mxu0 0.0
        %769 = vmatpush1.msra.mxu0 0.0
        %770 = vmatprep.subr.mxu0 0.0
        %771 = vmatpush1.msra.mxu0 0.0
        %772 = vmatprep.subr.mxu0 0.0
        %773 = vmatpush1.msra.mxu0 0.0
        %774 = vmatprep.subr.mxu0 0.0
        %775 = vmatpush1.msra.mxu0 0.0
        %776 = vmatprep.subr.mxu0 0.0
        %777 = vmatpush1.msra.mxu0 0.0
        %778 = vmatprep.subr.mxu0 0.0
        %779 = vmatpush1.msra.mxu0 0.0
        %780 = vmatprep.subr.mxu0 0.0
        %781 = vmatpush1.msra.mxu0 0.0
        %782 = vmatprep.subr.mxu0 0.0
        %783 = vmatpush1.msra.mxu0 0.0
        %784 = vmatprep.subr.mxu0 0.0
        %785 = vmatpush1.msra.mxu0 0.0
        %786 = vmatprep.subr.mxu0 0.0
        %787 = vmatpush1.msra.mxu0 0.0
        %788 = vmatprep.subr.mxu0 0.0
        %789 = vmatpush1.msra.mxu0 0.0
        %790 = vmatprep.subr.mxu0 0.0
        %791 = vmatpush1.msra.mxu0 0.0
        %792 = vmatprep.subr.mxu0 0.0
        %793 = vmatpush1.msra.mxu0 0.0
        %794 = vmatprep.subr.mxu0 0.0
        %795 = vmatpush1.msra.mxu0 0.0
        %796 = vmatprep.subr.mxu0 0.0
        %797 = vmatpush1.msra.mxu0 0.0
        %798 = vmatprep.subr.mxu0 0.0
        %799 = vmatpush1.msra.mxu0 0.0
        %800 = vmatprep.mubr.f32.mxu0 0.0
        %801 = vmatmul.mubr.f32.gmra.mrb[0].mxu0 %v731
        %v802 = vpop.f32.mrb[0].mxu0
        %v803 = vadd.f32 0.0, %v802
        %v804 = vpop.f32.mrb[0].mxu0
        %805 = vmatprep.mubr.f32.mxu0 0.0
        %806 = vmatmul.mubr.f32.gmra.mrb[0].mxu0 %v734
        %v807 = vpop.f32.mrb[0].mxu0
        %v808 = vadd.f32 0.0, %v807
        %v809 = vpop.f32.mrb[0].mxu0
        %810 = vdwg.mxu0
        %v811 = vadd.f32 %v718, %v803
        %v812 = vadd.f32 %v723, %v808
        %v813 = vsub.f32 0.0, %v811
        %v814 = vsub.f32 0.0, %v812
        %v815 = vmul.f32 %v813, 1.442695
        %v816 = vpow.pop %v815
        %v817 = vmul.f32 %v814, 1.442695
        %v818 = vpow.pop %v817
        %v819 = vadd.f32 %v816, 1.0
        %v820 = vadd.f32 %v818, 1.0
        %v821 = vrcp.pop %v819
        %v822 = vmul.f32 1.0, %v821
        %v823 = vrcp.pop %v820
        %v824 = vmul.f32 1.0, %v823
        %827 = vrot.lane.b32.xlu0 %v718, 96
        %v828 = vpop.permute.xlu0 %827
        %829 = vrot.lane.b32.xlu0 %v723, 96
        %v830 = vpop.permute.xlu0 %829
        %v833 = vmul.f32 %v822, %v828
        %v834 = vmul.f32 %v824, %v830
        %835 = vst.msk [vmem:[#allocation2] sm:$0xff] %vm546, 0.0
        %836 = vst.msk [vmem:[#allocation2 + $0x8] sm:$0xff] %vm546, 0.0
        %837 = vst.msk [vmem:[#allocation2 + $0x10] sm:$0xff] %vm546, 0.0
        %838 = vst.msk [vmem:[#allocation2 + $0x18] sm:$0xff] %vm546, 0.0
        %839 = vst.msk [vmem:[#allocation2 + $0x30] sm:$0xff] %vm546, 0.0
        %840 = vst.msk [vmem:[#allocation2 + $0x38] sm:$0xff] %vm546, 0.0
        %841 = vst.msk [vmem:[#allocation2 + $0x40] sm:$0xff] %vm546, 0.0
        %842 = vst.msk [vmem:[#allocation2 + $0x48] sm:$0xff] %vm546, 0.0
        %843 = vst.msk [vmem:[#allocation2 + $0x20] sm:$0xff] %vm546, %v833
        %844 = vst.msk [vmem:[#allocation2 + $0x28] sm:$0xff] %vm546, %v834
        %v845 = vld [vmem:[#allocation2] sm:$0xff]
        %v846 = vld [vmem:[#allocation2 + $0x8] sm:$0xff]
        %v847 = vld [vmem:[%s9] sm:$0x1]
        %v848 = vlaneseq
        %v849 = vshrl.u32 %v848, 7
        %v850 = vsub.s32 0, %v849
        %v851 = vrot.slane %v847, %v850
        %v852 = vmul.f32 %v845, %v851
        %v853 = vmul.f32 %v846, %v851
        %v854 = vadd.f32 %v852, 0.0
        %v855 = vadd.f32 %v853, 0.0
        %v856 = vld [vmem:[#allocation2 + $0x1] sm:$0xff]
        %v857 = vld [vmem:[#allocation2 + $0x9] sm:$0xff]
        %v858 = vld [vmem:[%s9 + $0x1] sm:$0x1]
        %v859 = vlaneseq
        %v860 = vshrl.u32 %v859, 7
        %v861 = vsub.s32 0, %v860
        %v862 = vrot.slane %v858, %v861
        %v863 = vmul.f32 %v856, %v862
        %v864 = vmul.f32 %v857, %v862
        %v865 = vadd.f32 %v854, %v863
        %v866 = vadd.f32 %v855, %v864
        %v867 = vld [vmem:[#allocation2 + $0x2] sm:$0xff]
        %v868 = vld [vmem:[#allocation2 + $0xa] sm:$0xff]
        %v869 = vld [vmem:[%s9 + $0x2] sm:$0x1]
        %v870 = vlaneseq
        %v871 = vshrl.u32 %v870, 7
        %v872 = vsub.s32 0, %v871
        %v873 = vrot.slane %v869, %v872
        %v874 = vmul.f32 %v867, %v873
        %v875 = vmul.f32 %v868, %v873
        %v876 = vadd.f32 %v865, %v874
        %v877 = vadd.f32 %v866, %v875
        %v878 = vld [vmem:[#allocation2 + $0x3] sm:$0xff]
        %v879 = vld [vmem:[#allocation2 + $0xb] sm:$0xff]
        %v880 = vld [vmem:[%s9 + $0x3] sm:$0x1]
        %v881 = vlaneseq
        %v882 = vshrl.u32 %v881, 7
        %v883 = vsub.s32 0, %v882
        %v884 = vrot.slane %v880, %v883
        %v885 = vmul.f32 %v878, %v884
        %v886 = vmul.f32 %v879, %v884
        %v887 = vadd.f32 %v876, %v885
        %v888 = vadd.f32 %v877, %v886
        %v889 = vld [vmem:[#allocation2 + $0x4] sm:$0xff]
        %v890 = vld [vmem:[#allocation2 + $0xc] sm:$0xff]
        %v891 = vld [vmem:[%s9 + $0x4] sm:$0x1]
        %v892 = vlaneseq
        %v893 = vshrl.u32 %v892, 7
        %v894 = vsub.s32 0, %v893
        %v895 = vrot.slane %v891, %v894
        %v896 = vmul.f32 %v889, %v895
        %v897 = vmul.f32 %v890, %v895
        %v898 = vadd.f32 %v887, %v896
        %v899 = vadd.f32 %v888, %v897
        %v900 = vld [vmem:[#allocation2 + $0x5] sm:$0xff]
        %v901 = vld [vmem:[#allocation2 + $0xd] sm:$0xff]
        %v902 = vld [vmem:[%s9 + $0x5] sm:$0x1]
        %v903 = vlaneseq
        %v904 = vshrl.u32 %v903, 7
        %v905 = vsub.s32 0, %v904
        %v906 = vrot.slane %v902, %v905
        %v907 = vmul.f32 %v900, %v906
        %v908 = vmul.f32 %v901, %v906
        %v909 = vadd.f32 %v898, %v907
        %v910 = vadd.f32 %v899, %v908
        %v911 = vld [vmem:[#allocation2 + $0x6] sm:$0xff]
        %v912 = vld [vmem:[#allocation2 + $0xe] sm:$0xff]
        %v913 = vld [vmem:[%s9 + $0x6] sm:$0x1]
        %v914 = vlaneseq
        %v915 = vshrl.u32 %v914, 7
        %v916 = vsub.s32 0, %v915
        %v917 = vrot.slane %v913, %v916
        %v918 = vmul.f32 %v911, %v917
        %v919 = vmul.f32 %v912, %v917
        %v920 = vadd.f32 %v909, %v918
        %v921 = vadd.f32 %v910, %v919
        %v922 = vld [vmem:[#allocation2 + $0x7] sm:$0xff]
        %v923 = vld [vmem:[#allocation2 + $0xf] sm:$0xff]
        %v924 = vld [vmem:[%s9 + $0x7] sm:$0x1]
        %v925 = vlaneseq
        %v926 = vshrl.u32 %v925, 7
        %v927 = vsub.s32 0, %v926
        %v928 = vrot.slane %v924, %v927
        %v929 = vmul.f32 %v922, %v928
        %v930 = vmul.f32 %v923, %v928
        %v931 = vadd.f32 %v920, %v929
        %v932 = vadd.f32 %v921, %v930
        %v933 = vld [vmem:[#allocation2 + $0x10] sm:$0xff]
        %v934 = vld [vmem:[%s9 + $0x8] sm:$0x1]
        %v935 = vlaneseq
        %v936 = vshrl.u32 %v935, 7
        %v937 = vsub.s32 0, %v936
        %v938 = vrot.slane %v934, %v937
        %v939 = vmul.f32 %v846, %v938
        %v940 = vmul.f32 %v933, %v938
        %v941 = vadd.f32 %v931, %v939
        %v942 = vadd.f32 %v932, %v940
        %v943 = vld [vmem:[#allocation2 + $0x11] sm:$0xff]
        %v944 = vld [vmem:[%s9 + $0x9] sm:$0x1]
        %v945 = vlaneseq
        %v946 = vshrl.u32 %v945, 7
        %v947 = vsub.s32 0, %v946
        %v948 = vrot.slane %v944, %v947
        %v949 = vmul.f32 %v857, %v948
        %v950 = vmul.f32 %v943, %v948
        %v951 = vadd.f32 %v941, %v949
        %v952 = vadd.f32 %v942, %v950
        %v953 = vld [vmem:[#allocation2 + $0x12] sm:$0xff]
        %v954 = vld [vmem:[%s9 + $0xa] sm:$0x1]
        %v955 = vlaneseq
        %v956 = vshrl.u32 %v955, 7
        %v957 = vsub.s32 0, %v956
        %v958 = vrot.slane %v954, %v957
        %v959 = vmul.f32 %v868, %v958
        %v960 = vmul.f32 %v953, %v958
        %v961 = vadd.f32 %v951, %v959
        %v962 = vadd.f32 %v952, %v960
        %v963 = vld [vmem:[#allocation2 + $0x13] sm:$0xff]
        %v964 = vld [vmem:[%s9 + $0xb] sm:$0x1]
        %v965 = vlaneseq
        %v966 = vshrl.u32 %v965, 7
        %v967 = vsub.s32 0, %v966
        %v968 = vrot.slane %v964, %v967
        %v969 = vmul.f32 %v879, %v968
        %v970 = vmul.f32 %v963, %v968
        %v971 = vadd.f32 %v961, %v969
        %v972 = vadd.f32 %v962, %v970
        %v973 = vld [vmem:[#allocation2 + $0x14] sm:$0xff]
        %v974 = vld [vmem:[%s9 + $0xc] sm:$0x1]
        %v975 = vlaneseq
        %v976 = vshrl.u32 %v975, 7
        %v977 = vsub.s32 0, %v976
        %v978 = vrot.slane %v974, %v977
        %v979 = vmul.f32 %v890, %v978
        %v980 = vmul.f32 %v973, %v978
        %v981 = vadd.f32 %v971, %v979
        %v982 = vadd.f32 %v972, %v980
        %v983 = vld [vmem:[#allocation2 + $0x15] sm:$0xff]
        %v984 = vld [vmem:[%s9 + $0xd] sm:$0x1]
        %v985 = vlaneseq
        %v986 = vshrl.u32 %v985, 7
        %v987 = vsub.s32 0, %v986
        %v988 = vrot.slane %v984, %v987
        %v989 = vmul.f32 %v901, %v988
        %v990 = vmul.f32 %v983, %v988
        %v991 = vadd.f32 %v981, %v989
        %v992 = vadd.f32 %v982, %v990
        %v993 = vld [vmem:[#allocation2 + $0x16] sm:$0xff]
        %v994 = vld [vmem:[%s9 + $0xe] sm:$0x1]
        %v995 = vlaneseq
        %v996 = vshrl.u32 %v995, 7
        %v997 = vsub.s32 0, %v996
        %v998 = vrot.slane %v994, %v997
        %v999 = vmul.f32 %v912, %v998
        %v1000 = vmul.f32 %v993, %v998
        %v1001 = vadd.f32 %v991, %v999
        %v1002 = vadd.f32 %v992, %v1000
        %v1003 = vld [vmem:[#allocation2 + $0x17] sm:$0xff]
        %v1004 = vld [vmem:[%s9 + $0xf] sm:$0x1]
        %v1005 = vlaneseq
        %v1006 = vshrl.u32 %v1005, 7
        %v1007 = vsub.s32 0, %v1006
        %v1008 = vrot.slane %v1004, %v1007
        %v1009 = vmul.f32 %v923, %v1008
        %v1010 = vmul.f32 %v1003, %v1008
        %v1011 = vadd.f32 %v1001, %v1009
        %v1012 = vadd.f32 %v1002, %v1010
        %v1013 = vld [vmem:[#allocation2 + $0x18] sm:$0xff]
        %v1014 = vld [vmem:[%s9 + $0x10] sm:$0x1]
        %v1015 = vlaneseq
        %v1016 = vshrl.u32 %v1015, 7
        %v1017 = vsub.s32 0, %v1016
        %v1018 = vrot.slane %v1014, %v1017
        %v1019 = vmul.f32 %v933, %v1018
        %v1020 = vmul.f32 %v1013, %v1018
        %v1021 = vadd.f32 %v1011, %v1019
        %v1022 = vadd.f32 %v1012, %v1020
        %v1023 = vld [vmem:[#allocation2 + $0x19] sm:$0xff]
        %v1024 = vld [vmem:[%s9 + $0x11] sm:$0x1]
        %v1025 = vlaneseq
        %v1026 = vshrl.u32 %v1025, 7
        %v1027 = vsub.s32 0, %v1026
        %v1028 = vrot.slane %v1024, %v1027
        %v1029 = vmul.f32 %v943, %v1028
        %v1030 = vmul.f32 %v1023, %v1028
        %v1031 = vadd.f32 %v1021, %v1029
        %v1032 = vadd.f32 %v1022, %v1030
        %v1033 = vld [vmem:[#allocation2 + $0x1a] sm:$0xff]
        %v1034 = vld [vmem:[%s9 + $0x12] sm:$0x1]
        %v1035 = vlaneseq
        %v1036 = vshrl.u32 %v1035, 7
        %v1037 = vsub.s32 0, %v1036
        %v1038 = vrot.slane %v1034, %v1037
        %v1039 = vmul.f32 %v953, %v1038
        %v1040 = vmul.f32 %v1033, %v1038
        %v1041 = vadd.f32 %v1031, %v1039
        %v1042 = vadd.f32 %v1032, %v1040
        %v1043 = vld [vmem:[#allocation2 + $0x1b] sm:$0xff]
        %v1044 = vld [vmem:[%s9 + $0x13] sm:$0x1]
        %v1045 = vlaneseq
        %v1046 = vshrl.u32 %v1045, 7
        %v1047 = vsub.s32 0, %v1046
        %v1048 = vrot.slane %v1044, %v1047
        %v1049 = vmul.f32 %v963, %v1048
        %v1050 = vmul.f32 %v1043, %v1048
        %v1051 = vadd.f32 %v1041, %v1049
        %v1052 = vadd.f32 %v1042, %v1050
        %v1053 = vld [vmem:[#allocation2 + $0x1c] sm:$0xff]
        %v1054 = vld [vmem:[%s9 + $0x14] sm:$0x1]
        %v1055 = vlaneseq
        %v1056 = vshrl.u32 %v1055, 7
        %v1057 = vsub.s32 0, %v1056
        %v1058 = vrot.slane %v1054, %v1057
        %v1059 = vmul.f32 %v973, %v1058
        %v1060 = vmul.f32 %v1053, %v1058
        %v1061 = vadd.f32 %v1051, %v1059
        %v1062 = vadd.f32 %v1052, %v1060
        %v1063 = vld [vmem:[#allocation2 + $0x1d] sm:$0xff]
        %v1064 = vld [vmem:[%s9 + $0x15] sm:$0x1]
        %v1065 = vlaneseq
        %v1066 = vshrl.u32 %v1065, 7
        %v1067 = vsub.s32 0, %v1066
        %v1068 = vrot.slane %v1064, %v1067
        %v1069 = vmul.f32 %v983, %v1068
        %v1070 = vmul.f32 %v1063, %v1068
        %v1071 = vadd.f32 %v1061, %v1069
        %v1072 = vadd.f32 %v1062, %v1070
        %v1073 = vld [vmem:[#allocation2 + $0x1e] sm:$0xff]
        %v1074 = vld [vmem:[%s9 + $0x16] sm:$0x1]
        %v1075 = vlaneseq
        %v1076 = vshrl.u32 %v1075, 7
        %v1077 = vsub.s32 0, %v1076
        %v1078 = vrot.slane %v1074, %v1077
        %v1079 = vmul.f32 %v993, %v1078
        %v1080 = vmul.f32 %v1073, %v1078
        %v1081 = vadd.f32 %v1071, %v1079
        %v1082 = vadd.f32 %v1072, %v1080
        %v1083 = vld [vmem:[#allocation2 + $0x1f] sm:$0xff]
        %v1084 = vld [vmem:[%s9 + $0x17] sm:$0x1]
        %v1085 = vlaneseq
        %v1086 = vshrl.u32 %v1085, 7
        %v1087 = vsub.s32 0, %v1086
        %v1088 = vrot.slane %v1084, %v1087
        %v1089 = vmul.f32 %v1003, %v1088
        %v1090 = vmul.f32 %v1083, %v1088
        %v1091 = vadd.f32 %v1081, %v1089
        %v1092 = vadd.f32 %v1082, %v1090
        %v1093 = vld [vmem:[#allocation2 + $0x20] sm:$0xff]
        %v1094 = vld [vmem:[%s9 + $0x18] sm:$0x1]
        %v1095 = vlaneseq
        %v1096 = vshrl.u32 %v1095, 7
        %v1097 = vsub.s32 0, %v1096
        %v1098 = vrot.slane %v1094, %v1097
        %v1099 = vmul.f32 %v1013, %v1098
        %v1100 = vmul.f32 %v1093, %v1098
        %v1101 = vadd.f32 %v1091, %v1099
        %v1102 = vadd.f32 %v1092, %v1100
        %v1103 = vld [vmem:[#allocation2 + $0x21] sm:$0xff]
        %v1104 = vld [vmem:[%s9 + $0x19] sm:$0x1]
        %v1105 = vlaneseq
        %v1106 = vshrl.u32 %v1105, 7
        %v1107 = vsub.s32 0, %v1106
        %v1108 = vrot.slane %v1104, %v1107
        %v1109 = vmul.f32 %v1023, %v1108
        %v1110 = vmul.f32 %v1103, %v1108
        %v1111 = vadd.f32 %v1101, %v1109
        %v1112 = vadd.f32 %v1102, %v1110
        %v1113 = vld [vmem:[#allocation2 + $0x22] sm:$0xff]
        %v1114 = vld [vmem:[%s9 + $0x1a] sm:$0x1]
        %v1115 = vlaneseq
        %v1116 = vshrl.u32 %v1115, 7
        %v1117 = vsub.s32 0, %v1116
        %v1118 = vrot.slane %v1114, %v1117
        %v1119 = vmul.f32 %v1033, %v1118
        %v1120 = vmul.f32 %v1113, %v1118
        %v1121 = vadd.f32 %v1111, %v1119
        %v1122 = vadd.f32 %v1112, %v1120
        %v1123 = vld [vmem:[#allocation2 + $0x23] sm:$0xff]
        %v1124 = vld [vmem:[%s9 + $0x1b] sm:$0x1]
        %v1125 = vlaneseq
        %v1126 = vshrl.u32 %v1125, 7
        %v1127 = vsub.s32 0, %v1126
        %v1128 = vrot.slane %v1124, %v1127
        %v1129 = vmul.f32 %v1043, %v1128
        %v1130 = vmul.f32 %v1123, %v1128
        %v1131 = vadd.f32 %v1121, %v1129
        %v1132 = vadd.f32 %v1122, %v1130
        %v1133 = vld [vmem:[#allocation2 + $0x24] sm:$0xff]
        %v1134 = vld [vmem:[%s9 + $0x1c] sm:$0x1]
        %v1135 = vlaneseq
        %v1136 = vshrl.u32 %v1135, 7
        %v1137 = vsub.s32 0, %v1136
        %v1138 = vrot.slane %v1134, %v1137
        %v1139 = vmul.f32 %v1053, %v1138
        %v1140 = vmul.f32 %v1133, %v1138
        %v1141 = vadd.f32 %v1131, %v1139
        %v1142 = vadd.f32 %v1132, %v1140
        %v1143 = vld [vmem:[#allocation2 + $0x25] sm:$0xff]
        %v1144 = vld [vmem:[%s9 + $0x1d] sm:$0x1]
        %v1145 = vlaneseq
        %v1146 = vshrl.u32 %v1145, 7
        %v1147 = vsub.s32 0, %v1146
        %v1148 = vrot.slane %v1144, %v1147
        %v1149 = vmul.f32 %v1063, %v1148
        %v1150 = vmul.f32 %v1143, %v1148
        %v1151 = vadd.f32 %v1141, %v1149
        %v1152 = vadd.f32 %v1142, %v1150
        %v1153 = vld [vmem:[#allocation2 + $0x26] sm:$0xff]
        %v1154 = vld [vmem:[%s9 + $0x1e] sm:$0x1]
        %v1155 = vlaneseq
        %v1156 = vshrl.u32 %v1155, 7
        %v1157 = vsub.s32 0, %v1156
        %v1158 = vrot.slane %v1154, %v1157
        %v1159 = vmul.f32 %v1073, %v1158
        %v1160 = vmul.f32 %v1153, %v1158
        %v1161 = vadd.f32 %v1151, %v1159
        %v1162 = vadd.f32 %v1152, %v1160
        %v1163 = vld [vmem:[#allocation2 + $0x27] sm:$0xff]
        %v1164 = vld [vmem:[%s9 + $0x1f] sm:$0x1]
        %v1165 = vlaneseq
        %v1166 = vshrl.u32 %v1165, 7
        %v1167 = vsub.s32 0, %v1166
        %v1168 = vrot.slane %v1164, %v1167
        %v1169 = vmul.f32 %v1083, %v1168
        %v1170 = vmul.f32 %v1163, %v1168
        %v1171 = vadd.f32 %v1161, %v1169
        %v1172 = vadd.f32 %v1162, %v1170
        %v1173 = vld [vmem:[#allocation2 + $0x28] sm:$0xff]
        %v1174 = vld [vmem:[%s9 + $0x20] sm:$0x1]
        %v1175 = vlaneseq
        %v1176 = vshrl.u32 %v1175, 7
        %v1177 = vsub.s32 0, %v1176
        %v1178 = vrot.slane %v1174, %v1177
        %v1179 = vmul.f32 %v1093, %v1178
        %v1180 = vmul.f32 %v1173, %v1178
        %v1181 = vadd.f32 %v1171, %v1179
        %v1182 = vadd.f32 %v1172, %v1180
        %v1183 = vld [vmem:[#allocation2 + $0x29] sm:$0xff]
        %v1184 = vld [vmem:[%s9 + $0x21] sm:$0x1]
        %v1185 = vlaneseq
        %v1186 = vshrl.u32 %v1185, 7
        %v1187 = vsub.s32 0, %v1186
        %v1188 = vrot.slane %v1184, %v1187
        %v1189 = vmul.f32 %v1103, %v1188
        %v1190 = vmul.f32 %v1183, %v1188
        %v1191 = vadd.f32 %v1181, %v1189
        %v1192 = vadd.f32 %v1182, %v1190
        %v1193 = vld [vmem:[#allocation2 + $0x2a] sm:$0xff]
        %v1194 = vld [vmem:[%s9 + $0x22] sm:$0x1]
        %v1195 = vlaneseq
        %v1196 = vshrl.u32 %v1195, 7
        %v1197 = vsub.s32 0, %v1196
        %v1198 = vrot.slane %v1194, %v1197
        %v1199 = vmul.f32 %v1113, %v1198
        %v1200 = vmul.f32 %v1193, %v1198
        %v1201 = vadd.f32 %v1191, %v1199
        %v1202 = vadd.f32 %v1192, %v1200
        %v1203 = vld [vmem:[#allocation2 + $0x2b] sm:$0xff]
        %v1204 = vld [vmem:[%s9 + $0x23] sm:$0x1]
        %v1205 = vlaneseq
        %v1206 = vshrl.u32 %v1205, 7
        %v1207 = vsub.s32 0, %v1206
        %v1208 = vrot.slane %v1204, %v1207
        %v1209 = vmul.f32 %v1123, %v1208
        %v1210 = vmul.f32 %v1203, %v1208
        %v1211 = vadd.f32 %v1201, %v1209
        %v1212 = vadd.f32 %v1202, %v1210
        %v1213 = vld [vmem:[#allocation2 + $0x2c] sm:$0xff]
        %v1214 = vld [vmem:[%s9 + $0x24] sm:$0x1]
        %v1215 = vlaneseq
        %v1216 = vshrl.u32 %v1215, 7
        %v1217 = vsub.s32 0, %v1216
        %v1218 = vrot.slane %v1214, %v1217
        %v1219 = vmul.f32 %v1133, %v1218
        %v1220 = vmul.f32 %v1213, %v1218
        %v1221 = vadd.f32 %v1211, %v1219
        %v1222 = vadd.f32 %v1212, %v1220
        %v1223 = vld [vmem:[#allocation2 + $0x2d] sm:$0xff]
        %v1224 = vld [vmem:[%s9 + $0x25] sm:$0x1]
        %v1225 = vlaneseq
        %v1226 = vshrl.u32 %v1225, 7
        %v1227 = vsub.s32 0, %v1226
        %v1228 = vrot.slane %v1224, %v1227
        %v1229 = vmul.f32 %v1143, %v1228
        %v1230 = vmul.f32 %v1223, %v1228
        %v1231 = vadd.f32 %v1221, %v1229
        %v1232 = vadd.f32 %v1222, %v1230
        %v1233 = vld [vmem:[#allocation2 + $0x2e] sm:$0xff]
        %v1234 = vld [vmem:[%s9 + $0x26] sm:$0x1]
        %v1235 = vlaneseq
        %v1236 = vshrl.u32 %v1235, 7
        %v1237 = vsub.s32 0, %v1236
        %v1238 = vrot.slane %v1234, %v1237
        %v1239 = vmul.f32 %v1153, %v1238
        %v1240 = vmul.f32 %v1233, %v1238
        %v1241 = vadd.f32 %v1231, %v1239
        %v1242 = vadd.f32 %v1232, %v1240
        %v1243 = vld [vmem:[#allocation2 + $0x2f] sm:$0xff]
        %v1244 = vld [vmem:[%s9 + $0x27] sm:$0x1]
        %v1245 = vlaneseq
        %v1246 = vshrl.u32 %v1245, 7
        %v1247 = vsub.s32 0, %v1246
        %v1248 = vrot.slane %v1244, %v1247
        %v1249 = vmul.f32 %v1163, %v1248
        %v1250 = vmul.f32 %v1243, %v1248
        %v1251 = vadd.f32 %v1241, %v1249
        %v1252 = vadd.f32 %v1242, %v1250
        %v1253 = vld [vmem:[#allocation2 + $0x30] sm:$0xff]
        %v1254 = vld [vmem:[%s9 + $0x28] sm:$0x1]
        %v1255 = vlaneseq
        %v1256 = vshrl.u32 %v1255, 7
        %v1257 = vsub.s32 0, %v1256
        %v1258 = vrot.slane %v1254, %v1257
        %v1259 = vmul.f32 %v1173, %v1258
        %v1260 = vmul.f32 %v1253, %v1258
        %v1261 = vadd.f32 %v1251, %v1259
        %v1262 = vadd.f32 %v1252, %v1260
        %v1263 = vld [vmem:[#allocation2 + $0x31] sm:$0xff]
        %v1264 = vld [vmem:[%s9 + $0x29] sm:$0x1]
        %v1265 = vlaneseq
        %v1266 = vshrl.u32 %v1265, 7
        %v1267 = vsub.s32 0, %v1266
        %v1268 = vrot.slane %v1264, %v1267
        %v1269 = vmul.f32 %v1183, %v1268
        %v1270 = vmul.f32 %v1263, %v1268
        %v1271 = vadd.f32 %v1261, %v1269
        %v1272 = vadd.f32 %v1262, %v1270
        %v1273 = vld [vmem:[#allocation2 + $0x32] sm:$0xff]
        %v1274 = vld [vmem:[%s9 + $0x2a] sm:$0x1]
        %v1275 = vlaneseq
        %v1276 = vshrl.u32 %v1275, 7
        %v1277 = vsub.s32 0, %v1276
        %v1278 = vrot.slane %v1274, %v1277
        %v1279 = vmul.f32 %v1193, %v1278
        %v1280 = vmul.f32 %v1273, %v1278
        %v1281 = vadd.f32 %v1271, %v1279
        %v1282 = vadd.f32 %v1272, %v1280
        %v1283 = vld [vmem:[#allocation2 + $0x33] sm:$0xff]
        %v1284 = vld [vmem:[%s9 + $0x2b] sm:$0x1]
        %v1285 = vlaneseq
        %v1286 = vshrl.u32 %v1285, 7
        %v1287 = vsub.s32 0, %v1286
        %v1288 = vrot.slane %v1284, %v1287
        %v1289 = vmul.f32 %v1203, %v1288
        %v1290 = vmul.f32 %v1283, %v1288
        %v1291 = vadd.f32 %v1281, %v1289
        %v1292 = vadd.f32 %v1282, %v1290
        %v1293 = vld [vmem:[#allocation2 + $0x34] sm:$0xff]
        %v1294 = vld [vmem:[%s9 + $0x2c] sm:$0x1]
        %v1295 = vlaneseq
        %v1296 = vshrl.u32 %v1295, 7
        %v1297 = vsub.s32 0, %v1296
        %v1298 = vrot.slane %v1294, %v1297
        %v1299 = vmul.f32 %v1213, %v1298
        %v1300 = vmul.f32 %v1293, %v1298
        %v1301 = vadd.f32 %v1291, %v1299
        %v1302 = vadd.f32 %v1292, %v1300
        %v1303 = vld [vmem:[#allocation2 + $0x35] sm:$0xff]
        %v1304 = vld [vmem:[%s9 + $0x2d] sm:$0x1]
        %v1305 = vlaneseq
        %v1306 = vshrl.u32 %v1305, 7
        %v1307 = vsub.s32 0, %v1306
        %v1308 = vrot.slane %v1304, %v1307
        %v1309 = vmul.f32 %v1223, %v1308
        %v1310 = vmul.f32 %v1303, %v1308
        %v1311 = vadd.f32 %v1301, %v1309
        %v1312 = vadd.f32 %v1302, %v1310
        %v1313 = vld [vmem:[#allocation2 + $0x36] sm:$0xff]
        %v1314 = vld [vmem:[%s9 + $0x2e] sm:$0x1]
        %v1315 = vlaneseq
        %v1316 = vshrl.u32 %v1315, 7
        %v1317 = vsub.s32 0, %v1316
        %v1318 = vrot.slane %v1314, %v1317
        %v1319 = vmul.f32 %v1233, %v1318
        %v1320 = vmul.f32 %v1313, %v1318
        %v1321 = vadd.f32 %v1311, %v1319
        %v1322 = vadd.f32 %v1312, %v1320
        %v1323 = vld [vmem:[#allocation2 + $0x37] sm:$0xff]
        %v1324 = vld [vmem:[%s9 + $0x2f] sm:$0x1]
        %v1325 = vlaneseq
        %v1326 = vshrl.u32 %v1325, 7
        %v1327 = vsub.s32 0, %v1326
        %v1328 = vrot.slane %v1324, %v1327
        %v1329 = vmul.f32 %v1243, %v1328
        %v1330 = vmul.f32 %v1323, %v1328
        %v1331 = vadd.f32 %v1321, %v1329
        %v1332 = vadd.f32 %v1322, %v1330
        %v1333 = vld [vmem:[#allocation2 + $0x38] sm:$0xff]
        %v1334 = vld [vmem:[%s9 + $0x30] sm:$0x1]
        %v1335 = vlaneseq
        %v1336 = vshrl.u32 %v1335, 7
        %v1337 = vsub.s32 0, %v1336
        %v1338 = vrot.slane %v1334, %v1337
        %v1339 = vmul.f32 %v1253, %v1338
        %v1340 = vmul.f32 %v1333, %v1338
        %v1341 = vadd.f32 %v1331, %v1339
        %v1342 = vadd.f32 %v1332, %v1340
        %v1343 = vld [vmem:[#allocation2 + $0x39] sm:$0xff]
        %v1344 = vld [vmem:[%s9 + $0x31] sm:$0x1]
        %v1345 = vlaneseq
        %v1346 = vshrl.u32 %v1345, 7
        %v1347 = vsub.s32 0, %v1346
        %v1348 = vrot.slane %v1344, %v1347
        %v1349 = vmul.f32 %v1263, %v1348
        %v1350 = vmul.f32 %v1343, %v1348
        %v1351 = vadd.f32 %v1341, %v1349
        %v1352 = vadd.f32 %v1342, %v1350
        %v1353 = vld [vmem:[#allocation2 + $0x3a] sm:$0xff]
        %v1354 = vld [vmem:[%s9 + $0x32] sm:$0x1]
        %v1355 = vlaneseq
        %v1356 = vshrl.u32 %v1355, 7
        %v1357 = vsub.s32 0, %v1356
        %v1358 = vrot.slane %v1354, %v1357
        %v1359 = vmul.f32 %v1273, %v1358
        %v1360 = vmul.f32 %v1353, %v1358
        %v1361 = vadd.f32 %v1351, %v1359
        %v1362 = vadd.f32 %v1352, %v1360
        %v1363 = vld [vmem:[#allocation2 + $0x3b] sm:$0xff]
        %v1364 = vld [vmem:[%s9 + $0x33] sm:$0x1]
        %v1365 = vlaneseq
        %v1366 = vshrl.u32 %v1365, 7
        %v1367 = vsub.s32 0, %v1366
        %v1368 = vrot.slane %v1364, %v1367
        %v1369 = vmul.f32 %v1283, %v1368
        %v1370 = vmul.f32 %v1363, %v1368
        %v1371 = vadd.f32 %v1361, %v1369
        %v1372 = vadd.f32 %v1362, %v1370
        %v1373 = vld [vmem:[#allocation2 + $0x3c] sm:$0xff]
        %v1374 = vld [vmem:[%s9 + $0x34] sm:$0x1]
        %v1375 = vlaneseq
        %v1376 = vshrl.u32 %v1375, 7
        %v1377 = vsub.s32 0, %v1376
        %v1378 = vrot.slane %v1374, %v1377
        %v1379 = vmul.f32 %v1293, %v1378
        %v1380 = vmul.f32 %v1373, %v1378
        %v1381 = vadd.f32 %v1371, %v1379
        %v1382 = vadd.f32 %v1372, %v1380
        %v1383 = vld [vmem:[#allocation2 + $0x3d] sm:$0xff]
        %v1384 = vld [vmem:[%s9 + $0x35] sm:$0x1]
        %v1385 = vlaneseq
        %v1386 = vshrl.u32 %v1385, 7
        %v1387 = vsub.s32 0, %v1386
        %v1388 = vrot.slane %v1384, %v1387
        %v1389 = vmul.f32 %v1303, %v1388
        %v1390 = vmul.f32 %v1383, %v1388
        %v1391 = vadd.f32 %v1381, %v1389
        %v1392 = vadd.f32 %v1382, %v1390
        %v1393 = vld [vmem:[#allocation2 + $0x3e] sm:$0xff]
        %v1394 = vld [vmem:[%s9 + $0x36] sm:$0x1]
        %v1395 = vlaneseq
        %v1396 = vshrl.u32 %v1395, 7
        %v1397 = vsub.s32 0, %v1396
        %v1398 = vrot.slane %v1394, %v1397
        %v1399 = vmul.f32 %v1313, %v1398
        %v1400 = vmul.f32 %v1393, %v1398
        %v1401 = vadd.f32 %v1391, %v1399
        %v1402 = vadd.f32 %v1392, %v1400
        %v1403 = vld [vmem:[#allocation2 + $0x3f] sm:$0xff]
        %v1404 = vld [vmem:[%s9 + $0x37] sm:$0x1]
        %v1405 = vlaneseq
        %v1406 = vshrl.u32 %v1405, 7
        %v1407 = vsub.s32 0, %v1406
        %v1408 = vrot.slane %v1404, %v1407
        %v1409 = vmul.f32 %v1323, %v1408
        %v1410 = vmul.f32 %v1403, %v1408
        %v1411 = vadd.f32 %v1401, %v1409
        %v1412 = vadd.f32 %v1402, %v1410
        %v1413 = vld [vmem:[#allocation2 + $0x40] sm:$0xff]
        %v1414 = vld [vmem:[%s9 + $0x38] sm:$0x1]
        %v1415 = vlaneseq
        %v1416 = vshrl.u32 %v1415, 7
        %v1417 = vsub.s32 0, %v1416
        %v1418 = vrot.slane %v1414, %v1417
        %v1419 = vmul.f32 %v1333, %v1418
        %v1420 = vmul.f32 %v1413, %v1418
        %v1421 = vadd.f32 %v1411, %v1419
        %v1422 = vadd.f32 %v1412, %v1420
        %v1423 = vld [vmem:[#allocation2 + $0x41] sm:$0xff]
        %v1424 = vld [vmem:[%s9 + $0x39] sm:$0x1]
        %v1425 = vlaneseq
        %v1426 = vshrl.u32 %v1425, 7
        %v1427 = vsub.s32 0, %v1426
        %v1428 = vrot.slane %v1424, %v1427
        %v1429 = vmul.f32 %v1343, %v1428
        %v1430 = vmul.f32 %v1423, %v1428
        %v1431 = vadd.f32 %v1421, %v1429
        %v1432 = vadd.f32 %v1422, %v1430
        %v1433 = vld [vmem:[#allocation2 + $0x42] sm:$0xff]
        %v1434 = vld [vmem:[%s9 + $0x3a] sm:$0x1]
        %v1435 = vlaneseq
        %v1436 = vshrl.u32 %v1435, 7
        %v1437 = vsub.s32 0, %v1436
        %v1438 = vrot.slane %v1434, %v1437
        %v1439 = vmul.f32 %v1353, %v1438
        %v1440 = vmul.f32 %v1433, %v1438
        %v1441 = vadd.f32 %v1431, %v1439
        %v1442 = vadd.f32 %v1432, %v1440
        %v1443 = vld [vmem:[#allocation2 + $0x43] sm:$0xff]
        %v1444 = vld [vmem:[%s9 + $0x3b] sm:$0x1]
        %v1445 = vlaneseq
        %v1446 = vshrl.u32 %v1445, 7
        %v1447 = vsub.s32 0, %v1446
        %v1448 = vrot.slane %v1444, %v1447
        %v1449 = vmul.f32 %v1363, %v1448
        %v1450 = vmul.f32 %v1443, %v1448
        %v1451 = vadd.f32 %v1441, %v1449
        %v1452 = vadd.f32 %v1442, %v1450
        %v1453 = vld [vmem:[#allocation2 + $0x44] sm:$0xff]
        %v1454 = vld [vmem:[%s9 + $0x3c] sm:$0x1]
        %v1455 = vlaneseq
        %v1456 = vshrl.u32 %v1455, 7
        %v1457 = vsub.s32 0, %v1456
        %v1458 = vrot.slane %v1454, %v1457
        %v1459 = vmul.f32 %v1373, %v1458
        %v1460 = vmul.f32 %v1453, %v1458
        %v1461 = vadd.f32 %v1451, %v1459
        %v1462 = vadd.f32 %v1452, %v1460
        %v1463 = vld [vmem:[#allocation2 + $0x45] sm:$0xff]
        %v1464 = vld [vmem:[%s9 + $0x3d] sm:$0x1]
        %v1465 = vlaneseq
        %v1466 = vshrl.u32 %v1465, 7
        %v1467 = vsub.s32 0, %v1466
        %v1468 = vrot.slane %v1464, %v1467
        %v1469 = vmul.f32 %v1383, %v1468
        %v1470 = vmul.f32 %v1463, %v1468
        %v1471 = vadd.f32 %v1461, %v1469
        %v1472 = vadd.f32 %v1462, %v1470
        %v1473 = vld [vmem:[#allocation2 + $0x46] sm:$0xff]
        %v1474 = vld [vmem:[%s9 + $0x3e] sm:$0x1]
        %v1475 = vlaneseq
        %v1476 = vshrl.u32 %v1475, 7
        %v1477 = vsub.s32 0, %v1476
        %v1478 = vrot.slane %v1474, %v1477
        %v1479 = vmul.f32 %v1393, %v1478
        %v1480 = vmul.f32 %v1473, %v1478
        %v1481 = vadd.f32 %v1471, %v1479
        %v1482 = vadd.f32 %v1472, %v1480
        %v1483 = vld [vmem:[#allocation2 + $0x47] sm:$0xff]
        %v1484 = vld [vmem:[%s9 + $0x3f] sm:$0x1]
        %v1485 = vlaneseq
        %v1486 = vshrl.u32 %v1485, 7
        %v1487 = vsub.s32 0, %v1486
        %v1488 = vrot.slane %v1484, %v1487
        %v1489 = vmul.f32 %v1403, %v1488
        %v1490 = vmul.f32 %v1483, %v1488
        %v1491 = vadd.f32 %v1481, %v1489
        %v1492 = vadd.f32 %v1482, %v1490
        %v1493 = vld [vmem:[#allocation2 + $0x48] sm:$0xff]
        %v1494 = vld [vmem:[%s9 + $0x40] sm:$0x1]
        %v1495 = vlaneseq
        %v1496 = vshrl.u32 %v1495, 7
        %v1497 = vsub.s32 0, %v1496
        %v1498 = vrot.slane %v1494, %v1497
        %v1499 = vmul.f32 %v1413, %v1498
        %v1500 = vmul.f32 %v1493, %v1498
        %v1501 = vadd.f32 %v1491, %v1499
        %v1502 = vadd.f32 %v1492, %v1500
        %v1503 = vld [vmem:[%s10] sm:$0x1]
        %v1505 = vlaneseq
        %v1506 = vshrl.u32 %v1505, 7
        %v1507 = vsub.s32 0, %v1506
        %v1508 = vrot.slane %v1503, %v1507
        %v1510 = vadd.f32 %v1501, %v1508
        %v1511 = vadd.f32 %v1502, %v1508
        %v1512 = vld [vmem:[%s11] sm:$0xff]
        %v1513 = vld [vmem:[%s11 + $0x8] sm:$0xff]
        %v1514 = vld [vmem:[%s11 + $0x10] sm:$0xff]
        %v1515 = vld [vmem:[%s11 + $0x18] sm:$0xff]
        %v1516 = vld [vmem:[%s12] sm:$0x1]
        %v1518 = vlaneseq
        %v1519 = vshrl.u32 %v1518, 7
        %v1520 = vsub.s32 0, %v1519
        %v1521 = vrot.slane %v1516, %v1520
        %v1524 = vsel %vm546, %v1510, 0
        %v1527 = vsel %vm546, %v1511, 0
        %1529 = vmatprep.subr.mxu0 0.0
        %1530 = vmatpush1.msra.mxu0 %v1512
        %1531 = vmatprep.subr.mxu0 0.0
        %1532 = vmatpush1.msra.mxu0 %v1513
        %1533 = vmatprep.subr.mxu0 0.0
        %1534 = vmatpush1.msra.mxu0 %v1514
        %1535 = vmatprep.subr.mxu0 0.0
        %1536 = vmatpush1.msra.mxu0 %v1515
        %1537 = vmatprep.subr.mxu0 0.0
        %1538 = vmatpush1.msra.mxu0 0.0
        %1539 = vmatprep.subr.mxu0 0.0
        %1540 = vmatpush1.msra.mxu0 0.0
        %1541 = vmatprep.subr.mxu0 0.0
        %1542 = vmatpush1.msra.mxu0 0.0
        %1543 = vmatprep.subr.mxu0 0.0
        %1544 = vmatpush1.msra.mxu0 0.0
        %1545 = vmatprep.subr.mxu0 0.0
        %1546 = vmatpush1.msra.mxu0 0.0
        %1547 = vmatprep.subr.mxu0 0.0
        %1548 = vmatpush1.msra.mxu0 0.0
        %1549 = vmatprep.subr.mxu0 0.0
        %1550 = vmatpush1.msra.mxu0 0.0
        %1551 = vmatprep.subr.mxu0 0.0
        %1552 = vmatpush1.msra.mxu0 0.0
        %1553 = vmatprep.subr.mxu0 0.0
        %1554 = vmatpush1.msra.mxu0 0.0
        %1555 = vmatprep.subr.mxu0 0.0
        %1556 = vmatpush1.msra.mxu0 0.0
        %1557 = vmatprep.subr.mxu0 0.0
        %1558 = vmatpush1.msra.mxu0 0.0
        %1559 = vmatprep.subr.mxu0 0.0
        %1560 = vmatpush1.msra.mxu0 0.0
        %1561 = vmatprep.subr.mxu0 0.0
        %1562 = vmatpush1.msra.mxu0 0.0
        %1563 = vmatprep.subr.mxu0 0.0
        %1564 = vmatpush1.msra.mxu0 0.0
        %1565 = vmatprep.subr.mxu0 0.0
        %1566 = vmatpush1.msra.mxu0 0.0
        %1567 = vmatprep.subr.mxu0 0.0
        %1568 = vmatpush1.msra.mxu0 0.0
        %1569 = vmatprep.subr.mxu0 0.0
        %1570 = vmatpush1.msra.mxu0 0.0
        %1571 = vmatprep.subr.mxu0 0.0
        %1572 = vmatpush1.msra.mxu0 0.0
        %1573 = vmatprep.subr.mxu0 0.0
        %1574 = vmatpush1.msra.mxu0 0.0
        %1575 = vmatprep.subr.mxu0 0.0
        %1576 = vmatpush1.msra.mxu0 0.0
        %1577 = vmatprep.subr.mxu0 0.0
        %1578 = vmatpush1.msra.mxu0 0.0
        %1579 = vmatprep.subr.mxu0 0.0
        %1580 = vmatpush1.msra.mxu0 0.0
        %1581 = vmatprep.subr.mxu0 0.0
        %1582 = vmatpush1.msra.mxu0 0.0
        %1583 = vmatprep.subr.mxu0 0.0
        %1584 = vmatpush1.msra.mxu0 0.0
        %1585 = vmatprep.subr.mxu0 0.0
        %1586 = vmatpush1.msra.mxu0 0.0
        %1587 = vmatprep.subr.mxu0 0.0
        %1588 = vmatpush1.msra.mxu0 0.0
        %1589 = vmatprep.subr.mxu0 0.0
        %1590 = vmatpush1.msra.mxu0 0.0
        %1591 = vmatprep.subr.mxu0 0.0
        %1592 = vmatpush1.msra.mxu0 0.0
        %1593 = vmatprep.mubr.f32.mxu0 0.0
        %1594 = vmatmul.mubr.f32.gmra.mrb[0].mxu0 %v1524
        %v1595 = vpop.f32.mrb[0].mxu0
        %v1596 = vadd.f32 %v1521, %v1595
        %v1597 = vpop.f32.mrb[0].mxu0
        %1598 = vmatprep.mubr.f32.mxu0 0.0
        %1599 = vmatmul.mubr.f32.gmra.mrb[0].mxu0 %v1527
        %v1600 = vpop.f32.mrb[0].mxu0
        %v1601 = vadd.f32 %v1521, %v1600
        %v1602 = vpop.f32.mrb[0].mxu0
        %1603 = vdwg.mxu0
        %v1604 = vmul.f32 %v1596, 0.5
        %v1605 = vmul.f32 %v1601, 0.5
        %v1606 = vmul.f32 %v1596, 0.70710677
        %v1607 = vmul.f32 %v1601, 0.70710677
        %vm1608 = vcmp.ge.f32.partialorder %v1606, 0.0
        %vm1609 = vcmp.ge.f32.partialorder %v1607, 0.0
        %v1610 = vsel %vm1608, 1.0, -1.0
        %v1611 = vsel %vm1609, 1.0, -1.0
        %v1612 = vand.u32 2147483647, %v1606
        %v1613 = vand.u32 2147483647, %v1607
        %v1614 = vmul.f32 %v1612, 0.3275911
        %v1615 = vmul.f32 %v1613, 0.3275911
        %v1616 = vadd.f32 %v1614, 1.0
        %v1617 = vadd.f32 %v1615, 1.0
        %v1618 = vrcp.pop %v1616
        %v1619 = vmul.f32 1.0, %v1618
        %v1620 = vrcp.pop %v1617
        %v1621 = vmul.f32 1.0, %v1620
        %v1622 = vmul.f32 %v1619, 1.0614054
        %v1623 = vmul.f32 %v1621, 1.0614054
        %v1624 = vadd.f32 %v1622, -1.4531521
        %v1625 = vadd.f32 %v1623, -1.4531521
        %v1626 = vmul.f32 %v1624, %v1619
        %v1627 = vmul.f32 %v1625, %v1621
        %v1628 = vadd.f32 %v1626, 1.4214138
        %v1629 = vadd.f32 %v1627, 1.4214138
        %v1630 = vmul.f32 %v1628, %v1619
        %v1631 = vmul.f32 %v1629, %v1621
        %v1632 = vadd.f32 %v1630, -0.28449672
        %v1633 = vadd.f32 %v1631, -0.28449672
        %v1634 = vmul.f32 %v1632, %v1619
        %v1635 = vmul.f32 %v1633, %v1621
        %v1636 = vadd.f32 %v1634, 0.2548296
        %v1637 = vadd.f32 %v1635, 0.2548296
        %v1638 = vmul.f32 %v1636, %v1619
        %v1639 = vmul.f32 %v1637, %v1621
        %v1640 = vsub.f32 0.0, %v1612
        %v1641 = vsub.f32 0.0, %v1613
        %v1642 = vmul.f32 %v1640, %v1612
        %v1643 = vmul.f32 %v1641, %v1613
        %v1644 = vmul.f32 %v1642, 1.442695
        %v1645 = vpow.pop %v1644
        %v1646 = vmul.f32 %v1643, 1.442695
        %v1647 = vpow.pop %v1646
        %v1648 = vmul.f32 %v1638, %v1645
        %v1649 = vmul.f32 %v1639, %v1647
        %v1650 = vsub.f32 1.0, %v1648
        %v1651 = vsub.f32 1.0, %v1649
        %v1652 = vmul.f32 %v1610, %v1650
        %v1653 = vmul.f32 %v1611, %v1651
        %v1654 = vadd.f32 %v1652, 1.0
        %v1655 = vadd.f32 %v1653, 1.0
        %v1656 = vmul.f32 %v1604, %v1654
        %v1657 = vmul.f32 %v1605, %v1655
        %v1658 = vld [vmem:[%s13] sm:$0xff]
        %v1659 = vld [vmem:[%s13 + $0x8] sm:$0xff]
        %v1660 = vld [vmem:[%s13 + $0x10] sm:$0xff]
        %v1661 = vld [vmem:[%s13 + $0x18] sm:$0xff]
        %v1662 = vld [vmem:[%s13 + $0x20] sm:$0xff]
        %v1663 = vld [vmem:[%s13 + $0x28] sm:$0xff]
        %v1664 = vld [vmem:[%s13 + $0x30] sm:$0xff]
        %v1665 = vld [vmem:[%s13 + $0x38] sm:$0xff]
        %v1666 = vld [vmem:[%s14] sm:$0x1]
        %v1668 = vlaneseq
        %v1669 = vshrl.u32 %v1668, 7
        %v1670 = vsub.s32 0, %v1669
        %v1671 = vrot.slane %v1666, %v1670
        %vm1673 = vcmask 523264
        %v1675 = vsel %vm1673, %v1656, 0
        %v1678 = vsel %vm1673, %v1657, 0
        %1680 = vmatprep.subr.mxu0 0.0
        %1681 = vmatpush1.msra.mxu0 %v1658
        %1682 = vmatprep.subr.mxu0 0.0
        %1683 = vmatpush1.msra.mxu0 %v1659
        %1684 = vmatprep.subr.mxu0 0.0
        %1685 = vmatpush1.msra.mxu0 %v1660
        %1686 = vmatprep.subr.mxu0 0.0
        %1687 = vmatpush1.msra.mxu0 %v1661
        %1688 = vmatprep.subr.mxu0 0.0
        %1689 = vmatpush1.msra.mxu0 %v1662
        %1690 = vmatprep.subr.mxu0 0.0
        %1691 = vmatpush1.msra.mxu0 %v1663
        %1692 = vmatprep.subr.mxu0 0.0
        %1693 = vmatpush1.msra.mxu0 %v1664
        %1694 = vmatprep.subr.mxu0 0.0
        %1695 = vmatpush1.msra.mxu0 %v1665
        %1696 = vmatprep.subr.mxu0 0.0
        %1697 = vmatpush1.msra.mxu0 0.0
        %1698 = vmatprep.subr.mxu0 0.0
        %1699 = vmatpush1.msra.mxu0 0.0
        %1700 = vmatprep.subr.mxu0 0.0
        %1701 = vmatpush1.msra.mxu0 0.0
        %1702 = vmatprep.subr.mxu0 0.0
        %1703 = vmatpush1.msra.mxu0 0.0
        %1704 = vmatprep.subr.mxu0 0.0
        %1705 = vmatpush1.msra.mxu0 0.0
        %1706 = vmatprep.subr.mxu0 0.0
        %1707 = vmatpush1.msra.mxu0 0.0
        %1708 = vmatprep.subr.mxu0 0.0
        %1709 = vmatpush1.msra.mxu0 0.0
        %1710 = vmatprep.subr.mxu0 0.0
        %1711 = vmatpush1.msra.mxu0 0.0
        %1712 = vmatprep.subr.mxu0 0.0
        %1713 = vmatpush1.msra.mxu0 0.0
        %1714 = vmatprep.subr.mxu0 0.0
        %1715 = vmatpush1.msra.mxu0 0.0
        %1716 = vmatprep.subr.mxu0 0.0
        %1717 = vmatpush1.msra.mxu0 0.0
        %1718 = vmatprep.subr.mxu0 0.0
        %1719 = vmatpush1.msra.mxu0 0.0
        %1720 = vmatprep.subr.mxu0 0.0
        %1721 = vmatpush1.msra.mxu0 0.0
        %1722 = vmatprep.subr.mxu0 0.0
        %1723 = vmatpush1.msra.mxu0 0.0
        %1724 = vmatprep.subr.mxu0 0.0
        %1725 = vmatpush1.msra.mxu0 0.0
        %1726 = vmatprep.subr.mxu0 0.0
        %1727 = vmatpush1.msra.mxu0 0.0
        %1728 = vmatprep.subr.mxu0 0.0
        %1729 = vmatpush1.msra.mxu0 0.0
        %1730 = vmatprep.subr.mxu0 0.0
        %1731 = vmatpush1.msra.mxu0 0.0
        %1732 = vmatprep.subr.mxu0 0.0
        %1733 = vmatpush1.msra.mxu0 0.0
        %1734 = vmatprep.subr.mxu0 0.0
        %1735 = vmatpush1.msra.mxu0 0.0
        %1736 = vmatprep.subr.mxu0 0.0
        %1737 = vmatpush1.msra.mxu0 0.0
        %1738 = vmatprep.subr.mxu0 0.0
        %1739 = vmatpush1.msra.mxu0 0.0
        %1740 = vmatprep.subr.mxu0 0.0
        %1741 = vmatpush1.msra.mxu0 0.0
        %1742 = vmatprep.subr.mxu0 0.0
        %1743 = vmatpush1.msra.mxu0 0.0
        %1744 = vmatprep.mubr.f32.mxu0 0.0
        %1745 = vmatmul.mubr.f32.gmra.mrb[0].mxu0 %v1675
        %v1746 = vpop.f32.mrb[0].mxu0
        %v1747 = vadd.f32 %v1671, %v1746
        %v1748 = vpop.f32.mrb[0].mxu0
        %1749 = vmatprep.mubr.f32.mxu0 0.0
        %1750 = vmatmul.mubr.f32.gmra.mrb[0].mxu0 %v1678
        %v1751 = vpop.f32.mrb[0].mxu0
        %v1752 = vadd.f32 %v1671, %v1751
        %v1753 = vpop.f32.mrb[0].mxu0
        %1754 = vdwg.mxu0
        %v1755 = vld [vmem:[%s15] sm:$0x1]
        %v1757 = vlaneseq
        %v1758 = vshrl.u32 %v1757, 7
        %v1759 = vsub.s32 0, %v1758
        %v1760 = vrot.slane %v1755, %v1759
        %v1762 = vmul.f32 %v1747, %v1760
        %v1763 = vmul.f32 %v1752, %v1760
        %v1764 = vadd.f32 %v542, %v1762
        %v1765 = vadd.f32 %v543, %v1763
        %1766 = vst.msk [vmem:[%s529] sm:$0xff] %vm546, %v1764
        %1767 = vst.msk [vmem:[%s529 + $0x8] sm:$0xff] %vm546, %v1765
        %s1768 = sand.u32 %s384, 1
        %s1769 = scalar_lea.sflag [#allocation4], %s1768
        %s1770 = sand.u32 %s384, 1
        %s1771 = smul.addr %s1770, 16
        %s1772 = scalar_lea.vmem [#allocation3], %s1771
        // Predicated region
        $region85: #{tpu_custom_call.1} parent=83 // pred_check
          %p1773 = pneg %p394
        $region86: #{tpu_custom_call.1} parent=83 // pred_check_branch
          %1775 = sbr.rel (%p1773) target = $region88
        $region87: #{tpu_custom_call.1} parent=83 // pred_region
          %s1777 = ssub.s32 256, 256
          %1778 = vsyncadd %s1769, %s1777
          %s1779 = smul.addr %s30, 2
          %s1780 = smul.addr %s1779, 128
          %s1781 = scalar_lea.hbm %s16, %s1780
          %s1782 = sshll.u32 %s1772, 4
          %s1783 = int_to_ptr.vmem [resolvable:$true] %s1782
          %1788 = dma.vmem_to_hbm [thread:$0]  %s1783, 256, %s1781, %s1769, 128, 128, 8
        $region88: #{tpu_custom_call.1} parent=83 // pred_fallthru
          _
      $region84: #{tpu_custom_call.1} parent=5 // pred_fallthru
        _
      %p1789 = scmp.le.s32.totalorder 2, %s25
      // Predicated region
      $region89: #{tpu_custom_call.1} parent=5 // pred_check
        %p1790 = pneg %p1789
      $region90: #{tpu_custom_call.1} parent=5 // pred_check_branch
        %1792 = sbr.rel (%p1790) target = $region92
      $region91: #{tpu_custom_call.1} parent=5 // pred_region
        %s1793 = ssub.s32 %s25, 2
        // Predicated region
        $region93: #{tpu_custom_call.1} parent=91 // pred_check
          %p1794 = pneg %p400
        $region94: #{tpu_custom_call.1} parent=91 // pred_check_branch
          %1796 = sbr.rel (%p1794) target = $region96
        $region95: #{tpu_custom_call.1} parent=91 // pred_region
          %s1797 = sand.u32 %s385, 1
          %s1798 = scalar_lea.sflag [#allocation4], %s1797
          %s1799 = sand.u32 %s385, 1
          %s1800 = smul.addr %s1799, 16
          %s1801 = scalar_lea.vmem [#allocation3], %s1800
          %1802 = dma.done %s1798, 256
        $region96: #{tpu_custom_call.1} parent=91 // pred_fallthru
          _
      $region92: #{tpu_custom_call.1} parent=5 // pred_fallthru
        _
    $region6: #{tpu_custom_call.1} parent=1 // loop_footer
      %s29 = sadd.s32 1, %s25
    $region7: #{tpu_custom_call.1} parent=1 // loop_footer_branch
      %24 = sbr.rel target = $region3
    $region8: #{tpu_custom_call.1} parent=1 // loop_exit
      _
    %1803 = vsyncpa [#allocation4], 1
    %s1804 = scalar_lea.sflag [#allocation4], 1
    %1805 = vsyncpa %s1804, 1

</llo_original>
